<compile_context>
chip_gen: v6e
topology: v6e:2x2x1
jax: 0.10.0
libtpu: 0.0.40
codegen_flags: <defaults>
</compile_context>

<pallas_src>
import math

import jax
import jax.numpy as jnp
import numpy as np
from jax.experimental import pallas as pl
from jax.experimental.pallas import tpu as pltpu

# ---------------------------------------------------------------------------
# Config (mirrors cfg / input_size of the PyTorch module)
# ---------------------------------------------------------------------------
INPUT_SIZE = (1, 4)        # (sentiment features, price features)
HIDDEN_SIZE = 32
HIDDEN_LAYERS = 2          # kernel hard-codes the 2-layer structure
FC_SIZE = 32
BATCH = 4
SEQ = 8
BN_EPS = 1e-5

H = HIDDEN_SIZE
G = 4 * H                  # 128 gate lanes  -> one full vreg lane-wise
BE = 2 * BATCH             # 8 combined rows -> the 8 sublanes
DIN = 8                    # packed layer-0 input width: [sent, price(4), 0, 1_sent, 1_price]
T = SEQ

# ---------------------------------------------------------------------------
# Parameter-slab row offsets (slab is (SLAB_ROWS, 128) f32, all offsets % 8 == 0)
# ---------------------------------------------------------------------------
ROW_B1 = 0      # (8,128)   layer-1 combined bias (sigmoid lanes pre-scaled by 0.5)
ROW_WIH0 = 8    # (8,128)   layer-0 input proj: row0 sent feat, rows1:5 price feats,
                #           row6 sent bias, row7 price bias (all scaled / reordered)
ROW_MASK = 16   # (8,128)   block mask for building the wavefront lhs
ROW_FS = 24     # (8,128)   gate fixup scale  (0.5 on i/f/o lanes, 1.0 on g lanes)
ROW_FO = 32     # (8,128)   gate fixup offset (0.5 on i/f/o lanes, 0.0 on g lanes)
ROW_W1 = 40     # (64,128)  fc1 weight (BN-folded), real cols 0:32
ROW_W2 = 104    # (128,128) fc2 weight (BN-folded), real block [0:32, 0:32]
ROW_W3 = 232    # (128,128) fc3 weight, real block [0:32, 0:1]
ROW_HB1 = 360   # (8,128)   fc1 bias (BN-folded), repeated rows
ROW_HB2 = 368   # (8,128)   fc2 bias (BN-folded), repeated rows
ROW_HB3 = 376   # (8,128)   fc3 bias, repeated rows
SLAB_ROWS = 384


# ---------------------------------------------------------------------------
# Single fused kernel: both 2-layer LSTM stacks (wavefront-fused) + FC head
# ---------------------------------------------------------------------------
def _fused_kernel(x_ref, slab_ref, rhs_ref, out_ref):
    f32 = jnp.float32

    # Small per-wave constants (one vreg tile each), loaded once.
    b1 = slab_ref[ROW_B1:ROW_B1 + BE, :]
    blk_mask = slab_ref[ROW_MASK:ROW_MASK + BE, :]
    fs = slab_ref[ROW_FS:ROW_FS + BE, :]
    fo = slab_ref[ROW_FO:ROW_FO + BE, :]

    # ---- Off-critical-path prologue: layer-0 input projection for ALL timesteps
    # at once (bias included via indicator columns of x).  (T*8, 8) @ (8, 128).
    gx = jnp.dot(x_ref[...], slab_ref[ROW_WIH0:ROW_WIH0 + DIN, :],
                 preferred_element_type=f32)                       # (T*BE, G)

    def gate_update(g, c):
        # One full-vreg tanh; sigmoid lanes were pre-scaled by 0.5 host-side, so
        # sigma(z) = 0.5*tanh(0.5*z) + 0.5 is a per-lane affine fixup of that tanh.
        a = fs * jnp.tanh(g) + fo
        i = a[:, 0:H]
        f = a[:, H:2 * H]
        o = a[:, 2 * H:3 * H]
        gg = a[:, 3 * H:4 * H]
        c_new = f * c + i * gg
        h_new = o * jnp.tanh(c_new)
        return h_new, c_new

    h0 = jnp.zeros((BE, H), f32)
    c0 = jnp.zeros((BE, H), f32)
    h1 = jnp.zeros((BE, H), f32)
    c1 = jnp.zeros((BE, H), f32)

    # ---- Wavefront recurrence: wave w advances layer-0 step w and layer-1 step
    # w-1 (independent given the previous states) with ONE (8,128)x(128,256) dot
    # against rhs = [[Whh0, Wih1], [0, Whh1]].  rhs is re-read from VMEM each wave
    # (vld hides under MXU latency; avoids holding 32 weight vregs live).
    for w in range(T + 1):
        if w == 0:
            # layer-0 step 0: recurrent term is zero, gates = x(0)@Wih0 + b0.
            h0, c0 = gate_update(gx[0:BE, :], c0)
        else:
            lhs = jnp.concatenate([h0, h0, h1, h1], axis=1) * blk_mask   # (8,128)
            mat = jnp.dot(lhs, rhs_ref[...], preferred_element_type=f32)  # (8,256)
            # layer-1 step w-1 (input = layer-0 output of step w-1, already in lhs)
            h1, c1 = gate_update(mat[:, G:2 * G] + b1, c1)
            if w < T:
                # layer-0 step w
                h0, c0 = gate_update(mat[:, 0:G] + gx[w * BE:(w + 1) * BE, :], c0)

    # ---- Head: concat(sent_last, price_last) -> fc1(+BN) -> relu -> fc2(+BN) -> relu -> fc3
    # Rows 0:4 carry the real batch ([sent | price]); rows 4:8 are a harmless
    # by-product kept only so every tile stays a full lane/sublane-dense (8,128) block.
    swapped = jnp.concatenate([h1[BATCH:BE, :], h1[0:BATCH, :]], axis=0)
    xh = jnp.concatenate([h1, swapped], axis=1)                           # (8, 2H)
    z = jnp.dot(xh, slab_ref[ROW_W1:ROW_W1 + 2 * H, :],
                preferred_element_type=f32) + slab_ref[ROW_HB1:ROW_HB1 + BE, :]
    z = jnp.maximum(z, 0.0)
    z = jnp.dot(z, slab_ref[ROW_W2:ROW_W2 + G, :],
                preferred_element_type=f32) + slab_ref[ROW_HB2:ROW_HB2 + BE, :]
    z = jnp.maximum(z, 0.0)
    z = jnp.dot(z, slab_ref[ROW_W3:ROW_W3 + G, :],
                preferred_element_type=f32) + slab_ref[ROW_HB3:ROW_HB3 + BE, :]
    out_ref[...] = z


# ---------------------------------------------------------------------------
# Wrapper: pack the two streams into one tiny (T*8, 8) tensor and call once.
# ---------------------------------------------------------------------------
@jax.jit
def lstm_regression_forward(sentiment_seq, price_seq, slab, rhs):
    if INPUT_SIZE[0] == 1:
        sentiment_seq = sentiment_seq[..., None]                  # (B, T) -> (B, T, 1)
    sent = jnp.transpose(sentiment_seq, (1, 0, 2)).astype(jnp.float32)   # (T, B, 1)
    price = jnp.transpose(price_seq, (1, 0, 2)).astype(jnp.float32)      # (T, B, 4)

    # Combined time-major input (T, BE, DIN): sentiment rows 0:4 / col 0, price rows
    # 4:8 / cols 1:5, bias-indicator columns 6 (sent) and 7 (price).
    x = jnp.zeros((T, BE, DIN), jnp.float32)
    x = x.at[:, 0:BATCH, 0:INPUT_SIZE[0]].set(sent)
    x = x.at[:, BATCH:BE, INPUT_SIZE[0]:INPUT_SIZE[0] + INPUT_SIZE[1]].set(price)
    x = x.at[:, 0:BATCH, DIN - 2].set(1.0)
    x = x.at[:, BATCH:BE, DIN - 1].set(1.0)
    x2d = x.reshape(T * BE, DIN)

    vmem = pl.BlockSpec(memory_space=pltpu.MemorySpace.VMEM)
    out = pl.pallas_call(
        _fused_kernel,
        out_shape=jax.ShapeDtypeStruct((BE, G), jnp.float32),
        in_specs=[vmem, vmem, vmem],
        out_specs=vmem,
    )(x2d, slab, rhs)
    return out[0:BATCH, 0:1]


# ---------------------------------------------------------------------------
# Host-side parameter packing (gate reorder i,f,g,o -> i,f,o,g; 0.5 sigmoid-lane
# pre-scale; block-diagonal stream stacking; BN folded into fc1/fc2).
# ---------------------------------------------------------------------------
def _prep_w(w):
    """PyTorch (4H, d) gate order (i,f,g,o) -> kernel (d, 4H) order (i,f,o,g),
    sigmoid-gate rows pre-scaled by 0.5 (for the tanh-based sigmoid)."""
    i, f, g, o = jnp.split(w, 4, axis=0)
    return jnp.concatenate([0.5 * i, 0.5 * f, 0.5 * o, g], axis=0).T


def _prep_b(b_ih, b_hh):
    b = b_ih + b_hh
    i, f, g, o = jnp.split(b, 4)
    return jnp.concatenate([0.5 * i, 0.5 * f, 0.5 * o, g])


def pack_params(sent_layers, price_layers, fc1, fc2, fc3, bn):
    s_l0, s_l1 = sent_layers
    p_l0, p_l1 = price_layers

    # Layer-0 input projection + biases via indicator columns.
    wih0 = jnp.zeros((DIN, G), jnp.float32)
    wih0 = wih0.at[0:INPUT_SIZE[0], :].set(_prep_w(s_l0[0]))
    wih0 = wih0.at[INPUT_SIZE[0]:INPUT_SIZE[0] + INPUT_SIZE[1], :].set(_prep_w(p_l0[0]))
    wih0 = wih0.at[DIN - 2, :].set(_prep_b(s_l0[2], s_l0[3]))
    wih0 = wih0.at[DIN - 1, :].set(_prep_b(p_l0[2], p_l0[3]))

    # Layer-1 bias rows (sentiment rows 0:4, price rows 4:8).
    b1_rows = jnp.concatenate(
        [jnp.tile(_prep_b(s_l1[2], s_l1[3])[None, :], (BATCH, 1)),
         jnp.tile(_prep_b(p_l1[2], p_l1[3])[None, :], (BATCH, 1))], axis=0)

    # Fused wavefront rhs: [[Whh0, Wih1], [0, Whh1]]  -> (128, 256).
    whh0 = jnp.concatenate([_prep_w(s_l0[1]), _prep_w(p_l0[1])], axis=0)   # (64,128)
    wih1 = jnp.concatenate([_prep_w(s_l1[0]), _prep_w(p_l1[0])], axis=0)   # (64,128)
    whh1 = jnp.concatenate([_prep_w(s_l1[1]), _prep_w(p_l1[1])], axis=0)   # (64,128)
    rhs = jnp.zeros((G, 2 * G), jnp.float32)
    rhs = rhs.at[0:2 * H, 0:G].set(whh0)
    rhs = rhs.at[0:2 * H, G:2 * G].set(wih1)
    rhs = rhs.at[2 * H:4 * H, G:2 * G].set(whh1)

    # lhs block mask: lane blocks [h0_sent, h0_price, h1_sent, h1_price].
    rows = jnp.arange(BE)[:, None]
    lanes = jnp.arange(G)[None, :]
    sent_block = ((lanes // H) % 2) == 0
    blk_mask = jnp.where(sent_block, rows < BATCH, rows >= BATCH).astype(jnp.float32)

    # Gate-activation fixup constants.
    sig_lane = jnp.arange(G) < 3 * H
    fs = jnp.tile(jnp.where(sig_lane, 0.5, 1.0)[None, :], (BE, 1))
    fo = jnp.tile(jnp.where(sig_lane, 0.5, 0.0)[None, :], (BE, 1))

    # Head: fold eval-mode BatchNorm into fc1 and fc2.
    gamma, beta, mean, var = bn
    scale = gamma / jnp.sqrt(var + BN_EPS)
    w1, b1h = fc1
    w2, b2h = fc2
    w3, b3h = fc3
    w1f = w1.T * scale[None, :]
    b1f = b1h * scale + beta - mean * scale
    w2f = w2.T * scale[None, :]
    b2f = b2h * scale + beta - mean * scale
    w3t = w3.T

    w1p = jnp.zeros((2 * H, G), jnp.float32).at[:, 0:FC_SIZE].set(w1f)
    w2p = jnp.zeros((G, G), jnp.float32).at[0:FC_SIZE, 0:FC_SIZE].set(w2f)
    w3p = jnp.zeros((G, G), jnp.float32).at[0:FC_SIZE, 0:1].set(w3t)
    hb1 = jnp.zeros((BE, G), jnp.float32).at[:, 0:FC_SIZE].set(
        jnp.broadcast_to(b1f, (BE, FC_SIZE)))
    hb2 = jnp.zeros((BE, G), jnp.float32).at[:, 0:FC_SIZE].set(
        jnp.broadcast_to(b2f, (BE, FC_SIZE)))
    hb3 = jnp.zeros((BE, G), jnp.float32).at[:, 0].set(b3h[0])

    slab = jnp.zeros((SLAB_ROWS, G), jnp.float32)
    slab = slab.at[ROW_B1:ROW_B1 + BE].set(b1_rows)
    slab = slab.at[ROW_WIH0:ROW_WIH0 + DIN].set(wih0)
    slab = slab.at[ROW_MASK:ROW_MASK + BE].set(blk_mask)
    slab = slab.at[ROW_FS:ROW_FS + BE].set(fs)
    slab = slab.at[ROW_FO:ROW_FO + BE].set(fo)
    slab = slab.at[ROW_W1:ROW_W1 + 2 * H].set(w1p)
    slab = slab.at[ROW_W2:ROW_W2 + G].set(w2p)
    slab = slab.at[ROW_W3:ROW_W3 + G].set(w3p)
    slab = slab.at[ROW_HB1:ROW_HB1 + BE].set(hb1)
    slab = slab.at[ROW_HB2:ROW_HB2 + BE].set(hb2)
    slab = slab.at[ROW_HB3:ROW_HB3 + BE].set(hb3)
    return slab, rhs


# ---------------------------------------------------------------------------
# Deterministic parameter construction (PyTorch-style uniform init)
# ---------------------------------------------------------------------------
def _uniform(key, shape, bound):
    return jax.random.uniform(key, shape, jnp.float32, -bound, bound)


def make_lstm_layer(key, d_in, hidden):
    k = 1.0 / math.sqrt(hidden)
    k1, k2, k3, k4, key = jax.random.split(key, 5)
    w_ih = _uniform(k1, (4 * hidden, d_in), k)
    w_hh = _uniform(k2, (4 * hidden, hidden), k)
    b_ih = _uniform(k3, (4 * hidden,), k)
    b_hh = _uniform(k4, (4 * hidden,), k)
    return key, (w_ih, w_hh, b_ih, b_hh)


def make_linear(key, d_in, d_out):
    k = 1.0 / math.sqrt(d_in)
    k1, k2, key = jax.random.split(key, 3)
    return key, (_uniform(k1, (d_out, d_in), k), _uniform(k2, (d_out,), k))


# ---------------------------------------------------------------------------
# Pure-JAX reference (PyTorch semantics, eval mode) for a correctness check.
# ---------------------------------------------------------------------------
def _lstm_ref(x, layers):
    seq = x
    hi = jax.lax.Precision.HIGHEST
    for (w_ih, w_hh, b_ih, b_hh) in layers:
        b = seq.shape[0]
        h = jnp.zeros((b, H), jnp.float32)
        c = jnp.zeros((b, H), jnp.float32)
        outs = []
        for t in range(seq.shape[1]):
            gates = (jnp.dot(seq[:, t, :], w_ih.T, precision=hi) + b_ih
                     + jnp.dot(h, w_hh.T, precision=hi) + b_hh)
            i, f, g, o = jnp.split(gates, 4, axis=1)
            c = jax.nn.sigmoid(f) * c + jax.nn.sigmoid(i) * jnp.tanh(g)
            h = jax.nn.sigmoid(o) * jnp.tanh(c)
            outs.append(h)
        seq = jnp.stack(outs, axis=1)
    return seq


def reference_forward(sentiment_seq, price_seq, sent_layers, price_layers, fc1, fc2, fc3, bn):
    # TODO(synk): dropout (head p=0.2 and nn.LSTM inter-layer) is identity (eval mode).
    hi = jax.lax.Precision.HIGHEST
    if INPUT_SIZE[0] == 1:
        sentiment_seq = sentiment_seq[..., None]
    sent_last = _lstm_ref(sentiment_seq, sent_layers)[:, -1, :]
    price_last = _lstm_ref(price_seq, price_layers)[:, -1, :]
    xh = jnp.concatenate([sent_last, price_last], axis=1)
    gamma, beta, mean, var = bn

    def bn1(v):
        return (v - mean) / jnp.sqrt(var + BN_EPS) * gamma + beta

    w1, b1 = fc1
    w2, b2 = fc2
    w3, b3 = fc3
    z = jnp.maximum(bn1(jnp.dot(xh, w1.T, precision=hi) + b1), 0.0)
    z = jnp.maximum(bn1(jnp.dot(z, w2.T, precision=hi) + b2), 0.0)
    return jnp.dot(z, w3.T, precision=hi) + b3


if __name__ == "__main__":
    key = jax.random.PRNGKey(0)

    key, s0 = make_lstm_layer(key, INPUT_SIZE[0], H)
    key, s1 = make_lstm_layer(key, H, H)
    key, p0 = make_lstm_layer(key, INPUT_SIZE[1], H)
    key, p1 = make_lstm_layer(key, H, H)
    key, fc1 = make_linear(key, 2 * H, FC_SIZE)
    key, fc2 = make_linear(key, FC_SIZE, FC_SIZE)
    key, fc3 = make_linear(key, FC_SIZE, 1)
    bn = (jnp.ones((FC_SIZE,), jnp.float32), jnp.zeros((FC_SIZE,), jnp.float32),
          jnp.zeros((FC_SIZE,), jnp.float32), jnp.ones((FC_SIZE,), jnp.float32))

    slab, rhs = pack_params((s0, s1), (p0, p1), fc1, fc2, fc3, bn)

    key, ks, kp = jax.random.split(key, 3)
    sentiment_seq = jax.random.normal(ks, (BATCH, SEQ), jnp.float32)              # (B, T)
    price_seq = jax.random.normal(kp, (BATCH, SEQ, INPUT_SIZE[1]), jnp.float32)   # (B, T, 4)

    out = lstm_regression_forward(sentiment_seq, price_seq, slab, rhs)
    out = jax.block_until_ready(out)
    assert out.shape == (BATCH, 1), out.shape
    assert bool(jnp.all(jnp.isfinite(out)))

    ref = reference_forward(sentiment_seq, price_seq, (s0, s1), (p0, p1), fc1, fc2, fc3, bn)
    np.testing.assert_allclose(np.asarray(out), np.asarray(ref), rtol=2e-2, atol=2e-2)

    print("KERNEL_OK")
</pallas_src>

<mosaic_0001>
module attributes {stable_mosaic.version = 11 : i64} {
  func.func @_fused_kernel(%arg0: memref<64x8xf32, #tpu.memory_space<vmem>>, %arg1: memref<384x128xf32, #tpu.memory_space<vmem>>, %arg2: memref<128x256xf32, #tpu.memory_space<vmem>>, %arg3: memref<8x128xf32, #tpu.memory_space<vmem>>) attributes {dimension_semantics = [], scalar_prefetch = 0 : i64, scratch_operands = 0 : i64, tpu.core_type = #tpu.core_type<tc>} {
    %c0 = arith.constant 0 : index
    %c0_0 = arith.constant 0 : index
    %0 = vector.load %arg1[%c0, %c0_0] : memref<384x128xf32, #tpu.memory_space<vmem>>, vector<8x128xf32>
    %c16 = arith.constant 16 : index
    %c0_1 = arith.constant 0 : index
    %1 = vector.load %arg1[%c16, %c0_1] : memref<384x128xf32, #tpu.memory_space<vmem>>, vector<8x128xf32>
    %c24 = arith.constant 24 : index
    %c0_2 = arith.constant 0 : index
    %2 = vector.load %arg1[%c24, %c0_2] : memref<384x128xf32, #tpu.memory_space<vmem>>, vector<8x128xf32>
    %c32 = arith.constant 32 : index
    %c0_3 = arith.constant 0 : index
    %3 = vector.load %arg1[%c32, %c0_3] : memref<384x128xf32, #tpu.memory_space<vmem>>, vector<8x128xf32>
    %c0_4 = arith.constant 0 : index
    %c0_5 = arith.constant 0 : index
    %4 = vector.load %arg0[%c0_4, %c0_5] : memref<64x8xf32, #tpu.memory_space<vmem>>, vector<64x8xf32>
    %c8 = arith.constant 8 : index
    %c0_6 = arith.constant 0 : index
    %5 = vector.load %arg1[%c8, %c0_6] : memref<384x128xf32, #tpu.memory_space<vmem>>, vector<8x128xf32>
    %cst = arith.constant dense<0.000000e+00> : vector<64x128xf32>
    %6 = tpu.matmul %4, %5, %cst {dimension_numbers = #tpu.dot_dimension_numbers<[1], [0], [0], [1], [0, 0, 1, 1], [], []>} : vector<64x8xf32>, vector<8x128xf32>, vector<64x128xf32> -> vector<64x128xf32>
    %cst_7 = arith.constant 0.000000e+00 : f32
    %7 = vector.broadcast %cst_7 : f32 to vector<8x32xf32>
    %cst_8 = arith.constant 0.000000e+00 : f32
    %8 = vector.broadcast %cst_8 : f32 to vector<8x32xf32>
    %cst_9 = arith.constant 0.000000e+00 : f32
    %9 = vector.broadcast %cst_9 : f32 to vector<8x32xf32>
    %10 = vector.extract_strided_slice %6 {offsets = [0, 0], sizes = [8, 128], strides = [1, 1]} : vector<64x128xf32> to vector<8x128xf32>
    %11 = math.tanh %10 : vector<8x128xf32>
    %12 = arith.mulf %2, %11 : vector<8x128xf32>
    %13 = arith.addf %12, %3 : vector<8x128xf32>
    %14 = vector.extract_strided_slice %13 {offsets = [0, 0], sizes = [8, 32], strides = [1, 1]} : vector<8x128xf32> to vector<8x32xf32>
    %15 = vector.extract_strided_slice %13 {offsets = [0, 32], sizes = [8, 32], strides = [1, 1]} : vector<8x128xf32> to vector<8x32xf32>
    %16 = vector.extract_strided_slice %13 {offsets = [0, 64], sizes = [8, 32], strides = [1, 1]} : vector<8x128xf32> to vector<8x32xf32>
    %17 = vector.extract_strided_slice %13 {offsets = [0, 96], sizes = [8, 32], strides = [1, 1]} : vector<8x128xf32> to vector<8x32xf32>
    %18 = arith.mulf %15, %7 : vector<8x32xf32>
    %19 = arith.mulf %14, %17 : vector<8x32xf32>
    %20 = arith.addf %18, %19 : vector<8x32xf32>
    %21 = math.tanh %20 : vector<8x32xf32>
    %22 = arith.mulf %16, %21 : vector<8x32xf32>
    %23 = tpu.concatenate %22, %22, %8, %8 in 1 : vector<8x32xf32>, vector<8x32xf32>, vector<8x32xf32>, vector<8x32xf32> -> vector<8x128xf32>
    %24 = arith.mulf %23, %1 : vector<8x128xf32>
    %c0_10 = arith.constant 0 : index
    %c0_11 = arith.constant 0 : index
    %25 = vector.load %arg2[%c0_10, %c0_11] : memref<128x256xf32, #tpu.memory_space<vmem>>, vector<128x256xf32>
    %cst_12 = arith.constant dense<0.000000e+00> : vector<8x256xf32>
    %26 = tpu.matmul %24, %25, %cst_12 {dimension_numbers = #tpu.dot_dimension_numbers<[1], [0], [0], [1], [0, 0, 1, 1], [], []>} : vector<8x128xf32>, vector<128x256xf32>, vector<8x256xf32> -> vector<8x256xf32>
    %27 = vector.extract_strided_slice %26 {offsets = [0, 128], sizes = [8, 128], strides = [1, 1]} : vector<8x256xf32> to vector<8x128xf32>
    %28 = arith.addf %27, %0 : vector<8x128xf32>
    %29 = math.tanh %28 : vector<8x128xf32>
    %30 = arith.mulf %2, %29 : vector<8x128xf32>
    %31 = arith.addf %30, %3 : vector<8x128xf32>
    %32 = vector.extract_strided_slice %31 {offsets = [0, 0], sizes = [8, 32], strides = [1, 1]} : vector<8x128xf32> to vector<8x32xf32>
    %33 = vector.extract_strided_slice %31 {offsets = [0, 32], sizes = [8, 32], strides = [1, 1]} : vector<8x128xf32> to vector<8x32xf32>
    %34 = vector.extract_strided_slice %31 {offsets = [0, 64], sizes = [8, 32], strides = [1, 1]} : vector<8x128xf32> to vector<8x32xf32>
    %35 = vector.extract_strided_slice %31 {offsets = [0, 96], sizes = [8, 32], strides = [1, 1]} : vector<8x128xf32> to vector<8x32xf32>
    %36 = arith.mulf %33, %9 : vector<8x32xf32>
    %37 = arith.mulf %32, %35 : vector<8x32xf32>
    %38 = arith.addf %36, %37 : vector<8x32xf32>
    %39 = math.tanh %38 : vector<8x32xf32>
    %40 = arith.mulf %34, %39 : vector<8x32xf32>
    %41 = vector.extract_strided_slice %26 {offsets = [0, 0], sizes = [8, 128], strides = [1, 1]} : vector<8x256xf32> to vector<8x128xf32>
    %42 = vector.extract_strided_slice %6 {offsets = [8, 0], sizes = [8, 128], strides = [1, 1]} : vector<64x128xf32> to vector<8x128xf32>
    %43 = arith.addf %41, %42 : vector<8x128xf32>
    %44 = math.tanh %43 : vector<8x128xf32>
    %45 = arith.mulf %2, %44 : vector<8x128xf32>
    %46 = arith.addf %45, %3 : vector<8x128xf32>
    %47 = vector.extract_strided_slice %46 {offsets = [0, 0], sizes = [8, 32], strides = [1, 1]} : vector<8x128xf32> to vector<8x32xf32>
    %48 = vector.extract_strided_slice %46 {offsets = [0, 32], sizes = [8, 32], strides = [1, 1]} : vector<8x128xf32> to vector<8x32xf32>
    %49 = vector.extract_strided_slice %46 {offsets = [0, 64], sizes = [8, 32], strides = [1, 1]} : vector<8x128xf32> to vector<8x32xf32>
    %50 = vector.extract_strided_slice %46 {offsets = [0, 96], sizes = [8, 32], strides = [1, 1]} : vector<8x128xf32> to vector<8x32xf32>
    %51 = arith.mulf %48, %20 : vector<8x32xf32>
    %52 = arith.mulf %47, %50 : vector<8x32xf32>
    %53 = arith.addf %51, %52 : vector<8x32xf32>
    %54 = math.tanh %53 : vector<8x32xf32>
    %55 = arith.mulf %49, %54 : vector<8x32xf32>
    %56 = tpu.concatenate %55, %55, %40, %40 in 1 : vector<8x32xf32>, vector<8x32xf32>, vector<8x32xf32>, vector<8x32xf32> -> vector<8x128xf32>
    %57 = arith.mulf %56, %1 : vector<8x128xf32>
    %c0_13 = arith.constant 0 : index
    %c0_14 = arith.constant 0 : index
    %58 = vector.load %arg2[%c0_13, %c0_14] : memref<128x256xf32, #tpu.memory_space<vmem>>, vector<128x256xf32>
    %cst_15 = arith.constant dense<0.000000e+00> : vector<8x256xf32>
    %59 = tpu.matmul %57, %58, %cst_15 {dimension_numbers = #tpu.dot_dimension_numbers<[1], [0], [0], [1], [0, 0, 1, 1], [], []>} : vector<8x128xf32>, vector<128x256xf32>, vector<8x256xf32> -> vector<8x256xf32>
    %60 = vector.extract_strided_slice %59 {offsets = [0, 128], sizes = [8, 128], strides = [1, 1]} : vector<8x256xf32> to vector<8x128xf32>
    %61 = arith.addf %60, %0 : vector<8x128xf32>
    %62 = math.tanh %61 : vector<8x128xf32>
    %63 = arith.mulf %2, %62 : vector<8x128xf32>
    %64 = arith.addf %63, %3 : vector<8x128xf32>
    %65 = vector.extract_strided_slice %64 {offsets = [0, 0], sizes = [8, 32], strides = [1, 1]} : vector<8x128xf32> to vector<8x32xf32>
    %66 = vector.extract_strided_slice %64 {offsets = [0, 32], sizes = [8, 32], strides = [1, 1]} : vector<8x128xf32> to vector<8x32xf32>
    %67 = vector.extract_strided_slice %64 {offsets = [0, 64], sizes = [8, 32], strides = [1, 1]} : vector<8x128xf32> to vector<8x32xf32>
    %68 = vector.extract_strided_slice %64 {offsets = [0, 96], sizes = [8, 32], strides = [1, 1]} : vector<8x128xf32> to vector<8x32xf32>
    %69 = arith.mulf %66, %38 : vector<8x32xf32>
    %70 = arith.mulf %65, %68 : vector<8x32xf32>
    %71 = arith.addf %69, %70 : vector<8x32xf32>
    %72 = math.tanh %71 : vector<8x32xf32>
    %73 = arith.mulf %67, %72 : vector<8x32xf32>
    %74 = vector.extract_strided_slice %59 {offsets = [0, 0], sizes = [8, 128], strides = [1, 1]} : vector<8x256xf32> to vector<8x128xf32>
    %75 = vector.extract_strided_slice %6 {offsets = [16, 0], sizes = [8, 128], strides = [1, 1]} : vector<64x128xf32> to vector<8x128xf32>
    %76 = arith.addf %74, %75 : vector<8x128xf32>
    %77 = math.tanh %76 : vector<8x128xf32>
    %78 = arith.mulf %2, %77 : vector<8x128xf32>
    %79 = arith.addf %78, %3 : vector<8x128xf32>
    %80 = vector.extract_strided_slice %79 {offsets = [0, 0], sizes = [8, 32], strides = [1, 1]} : vector<8x128xf32> to vector<8x32xf32>
    %81 = vector.extract_strided_slice %79 {offsets = [0, 32], sizes = [8, 32], strides = [1, 1]} : vector<8x128xf32> to vector<8x32xf32>
    %82 = vector.extract_strided_slice %79 {offsets = [0, 64], sizes = [8, 32], strides = [1, 1]} : vector<8x128xf32> to vector<8x32xf32>
    %83 = vector.extract_strided_slice %79 {offsets = [0, 96], sizes = [8, 32], strides = [1, 1]} : vector<8x128xf32> to vector<8x32xf32>
    %84 = arith.mulf %81, %53 : vector<8x32xf32>
    %85 = arith.mulf %80, %83 : vector<8x32xf32>
    %86 = arith.addf %84, %85 : vector<8x32xf32>
    %87 = math.tanh %86 : vector<8x32xf32>
    %88 = arith.mulf %82, %87 : vector<8x32xf32>
    %89 = tpu.concatenate %88, %88, %73, %73 in 1 : vector<8x32xf32>, vector<8x32xf32>, vector<8x32xf32>, vector<8x32xf32> -> vector<8x128xf32>
    %90 = arith.mulf %89, %1 : vector<8x128xf32>
    %c0_16 = arith.constant 0 : index
    %c0_17 = arith.constant 0 : index
    %91 = vector.load %arg2[%c0_16, %c0_17] : memref<128x256xf32, #tpu.memory_space<vmem>>, vector<128x256xf32>
    %cst_18 = arith.constant dense<0.000000e+00> : vector<8x256xf32>
    %92 = tpu.matmul %90, %91, %cst_18 {dimension_numbers = #tpu.dot_dimension_numbers<[1], [0], [0], [1], [0, 0, 1, 1], [], []>} : vector<8x128xf32>, vector<128x256xf32>, vector<8x256xf32> -> vector<8x256xf32>
    %93 = vector.extract_strided_slice %92 {offsets = [0, 128], sizes = [8, 128], strides = [1, 1]} : vector<8x256xf32> to vector<8x128xf32>
    %94 = arith.addf %93, %0 : vector<8x128xf32>
    %95 = math.tanh %94 : vector<8x128xf32>
    %96 = arith.mulf %2, %95 : vector<8x128xf32>
    %97 = arith.addf %96, %3 : vector<8x128xf32>
    %98 = vector.extract_strided_slice %97 {offsets = [0, 0], sizes = [8, 32], strides = [1, 1]} : vector<8x128xf32> to vector<8x32xf32>
    %99 = vector.extract_strided_slice %97 {offsets = [0, 32], sizes = [8, 32], strides = [1, 1]} : vector<8x128xf32> to vector<8x32xf32>
    %100 = vector.extract_strided_slice %97 {offsets = [0, 64], sizes = [8, 32], strides = [1, 1]} : vector<8x128xf32> to vector<8x32xf32>
    %101 = vector.extract_strided_slice %97 {offsets = [0, 96], sizes = [8, 32], strides = [1, 1]} : vector<8x128xf32> to vector<8x32xf32>
    %102 = arith.mulf %99, %71 : vector<8x32xf32>
    %103 = arith.mulf %98, %101 : vector<8x32xf32>
    %104 = arith.addf %102, %103 : vector<8x32xf32>
    %105 = math.tanh %104 : vector<8x32xf32>
    %106 = arith.mulf %100, %105 : vector<8x32xf32>
    %107 = vector.extract_strided_slice %92 {offsets = [0, 0], sizes = [8, 128], strides = [1, 1]} : vector<8x256xf32> to vector<8x128xf32>
    %108 = vector.extract_strided_slice %6 {offsets = [24, 0], sizes = [8, 128], strides = [1, 1]} : vector<64x128xf32> to vector<8x128xf32>
    %109 = arith.addf %107, %108 : vector<8x128xf32>
    %110 = math.tanh %109 : vector<8x128xf32>
    %111 = arith.mulf %2, %110 : vector<8x128xf32>
    %112 = arith.addf %111, %3 : vector<8x128xf32>
    %113 = vector.extract_strided_slice %112 {offsets = [0, 0], sizes = [8, 32], strides = [1, 1]} : vector<8x128xf32> to vector<8x32xf32>
    %114 = vector.extract_strided_slice %112 {offsets = [0, 32], sizes = [8, 32], strides = [1, 1]} : vector<8x128xf32> to vector<8x32xf32>
    %115 = vector.extract_strided_slice %112 {offsets = [0, 64], sizes = [8, 32], strides = [1, 1]} : vector<8x128xf32> to vector<8x32xf32>
    %116 = vector.extract_strided_slice %112 {offsets = [0, 96], sizes = [8, 32], strides = [1, 1]} : vector<8x128xf32> to vector<8x32xf32>
    %117 = arith.mulf %114, %86 : vector<8x32xf32>
    %118 = arith.mulf %113, %116 : vector<8x32xf32>
    %119 = arith.addf %117, %118 : vector<8x32xf32>
    %120 = math.tanh %119 : vector<8x32xf32>
    %121 = arith.mulf %115, %120 : vector<8x32xf32>
    %122 = tpu.concatenate %121, %121, %106, %106 in 1 : vector<8x32xf32>, vector<8x32xf32>, vector<8x32xf32>, vector<8x32xf32> -> vector<8x128xf32>
    %123 = arith.mulf %122, %1 : vector<8x128xf32>
    %c0_19 = arith.constant 0 : index
    %c0_20 = arith.constant 0 : index
    %124 = vector.load %arg2[%c0_19, %c0_20] : memref<128x256xf32, #tpu.memory_space<vmem>>, vector<128x256xf32>
    %cst_21 = arith.constant dense<0.000000e+00> : vector<8x256xf32>
    %125 = tpu.matmul %123, %124, %cst_21 {dimension_numbers = #tpu.dot_dimension_numbers<[1], [0], [0], [1], [0, 0, 1, 1], [], []>} : vector<8x128xf32>, vector<128x256xf32>, vector<8x256xf32> -> vector<8x256xf32>
    %126 = vector.extract_strided_slice %125 {offsets = [0, 128], sizes = [8, 128], strides = [1, 1]} : vector<8x256xf32> to vector<8x128xf32>
    %127 = arith.addf %126, %0 : vector<8x128xf32>
    %128 = math.tanh %127 : vector<8x128xf32>
    %129 = arith.mulf %2, %128 : vector<8x128xf32>
    %130 = arith.addf %129, %3 : vector<8x128xf32>
    %131 = vector.extract_strided_slice %130 {offsets = [0, 0], sizes = [8, 32], strides = [1, 1]} : vector<8x128xf32> to vector<8x32xf32>
    %132 = vector.extract_strided_slice %130 {offsets = [0, 32], sizes = [8, 32], strides = [1, 1]} : vector<8x128xf32> to vector<8x32xf32>
    %133 = vector.extract_strided_slice %130 {offsets = [0, 64], sizes = [8, 32], strides = [1, 1]} : vector<8x128xf32> to vector<8x32xf32>
    %134 = vector.extract_strided_slice %130 {offsets = [0, 96], sizes = [8, 32], strides = [1, 1]} : vector<8x128xf32> to vector<8x32xf32>
    %135 = arith.mulf %132, %104 : vector<8x32xf32>
    %136 = arith.mulf %131, %134 : vector<8x32xf32>
    %137 = arith.addf %135, %136 : vector<8x32xf32>
    %138 = math.tanh %137 : vector<8x32xf32>
    %139 = arith.mulf %133, %138 : vector<8x32xf32>
    %140 = vector.extract_strided_slice %125 {offsets = [0, 0], sizes = [8, 128], strides = [1, 1]} : vector<8x256xf32> to vector<8x128xf32>
    %141 = vector.extract_strided_slice %6 {offsets = [32, 0], sizes = [8, 128], strides = [1, 1]} : vector<64x128xf32> to vector<8x128xf32>
    %142 = arith.addf %140, %141 : vector<8x128xf32>
    %143 = math.tanh %142 : vector<8x128xf32>
    %144 = arith.mulf %2, %143 : vector<8x128xf32>
    %145 = arith.addf %144, %3 : vector<8x128xf32>
    %146 = vector.extract_strided_slice %145 {offsets = [0, 0], sizes = [8, 32], strides = [1, 1]} : vector<8x128xf32> to vector<8x32xf32>
    %147 = vector.extract_strided_slice %145 {offsets = [0, 32], sizes = [8, 32], strides = [1, 1]} : vector<8x128xf32> to vector<8x32xf32>
    %148 = vector.extract_strided_slice %145 {offsets = [0, 64], sizes = [8, 32], strides = [1, 1]} : vector<8x128xf32> to vector<8x32xf32>
    %149 = vector.extract_strided_slice %145 {offsets = [0, 96], sizes = [8, 32], strides = [1, 1]} : vector<8x128xf32> to vector<8x32xf32>
    %150 = arith.mulf %147, %119 : vector<8x32xf32>
    %151 = arith.mulf %146, %149 : vector<8x32xf32>
    %152 = arith.addf %150, %151 : vector<8x32xf32>
    %153 = math.tanh %152 : vector<8x32xf32>
    %154 = arith.mulf %148, %153 : vector<8x32xf32>
    %155 = tpu.concatenate %154, %154, %139, %139 in 1 : vector<8x32xf32>, vector<8x32xf32>, vector<8x32xf32>, vector<8x32xf32> -> vector<8x128xf32>
    %156 = arith.mulf %155, %1 : vector<8x128xf32>
    %c0_22 = arith.constant 0 : index
    %c0_23 = arith.constant 0 : index
    %157 = vector.load %arg2[%c0_22, %c0_23] : memref<128x256xf32, #tpu.memory_space<vmem>>, vector<128x256xf32>
    %cst_24 = arith.constant dense<0.000000e+00> : vector<8x256xf32>
    %158 = tpu.matmul %156, %157, %cst_24 {dimension_numbers = #tpu.dot_dimension_numbers<[1], [0], [0], [1], [0, 0, 1, 1], [], []>} : vector<8x128xf32>, vector<128x256xf32>, vector<8x256xf32> -> vector<8x256xf32>
    %159 = vector.extract_strided_slice %158 {offsets = [0, 128], sizes = [8, 128], strides = [1, 1]} : vector<8x256xf32> to vector<8x128xf32>
    %160 = arith.addf %159, %0 : vector<8x128xf32>
    %161 = math.tanh %160 : vector<8x128xf32>
    %162 = arith.mulf %2, %161 : vector<8x128xf32>
    %163 = arith.addf %162, %3 : vector<8x128xf32>
    %164 = vector.extract_strided_slice %163 {offsets = [0, 0], sizes = [8, 32], strides = [1, 1]} : vector<8x128xf32> to vector<8x32xf32>
    %165 = vector.extract_strided_slice %163 {offsets = [0, 32], sizes = [8, 32], strides = [1, 1]} : vector<8x128xf32> to vector<8x32xf32>
    %166 = vector.extract_strided_slice %163 {offsets = [0, 64], sizes = [8, 32], strides = [1, 1]} : vector<8x128xf32> to vector<8x32xf32>
    %167 = vector.extract_strided_slice %163 {offsets = [0, 96], sizes = [8, 32], strides = [1, 1]} : vector<8x128xf32> to vector<8x32xf32>
    %168 = arith.mulf %165, %137 : vector<8x32xf32>
    %169 = arith.mulf %164, %167 : vector<8x32xf32>
    %170 = arith.addf %168, %169 : vector<8x32xf32>
    %171 = math.tanh %170 : vector<8x32xf32>
    %172 = arith.mulf %166, %171 : vector<8x32xf32>
    %173 = vector.extract_strided_slice %158 {offsets = [0, 0], sizes = [8, 128], strides = [1, 1]} : vector<8x256xf32> to vector<8x128xf32>
    %174 = vector.extract_strided_slice %6 {offsets = [40, 0], sizes = [8, 128], strides = [1, 1]} : vector<64x128xf32> to vector<8x128xf32>
    %175 = arith.addf %173, %174 : vector<8x128xf32>
    %176 = math.tanh %175 : vector<8x128xf32>
    %177 = arith.mulf %2, %176 : vector<8x128xf32>
    %178 = arith.addf %177, %3 : vector<8x128xf32>
    %179 = vector.extract_strided_slice %178 {offsets = [0, 0], sizes = [8, 32], strides = [1, 1]} : vector<8x128xf32> to vector<8x32xf32>
    %180 = vector.extract_strided_slice %178 {offsets = [0, 32], sizes = [8, 32], strides = [1, 1]} : vector<8x128xf32> to vector<8x32xf32>
    %181 = vector.extract_strided_slice %178 {offsets = [0, 64], sizes = [8, 32], strides = [1, 1]} : vector<8x128xf32> to vector<8x32xf32>
    %182 = vector.extract_strided_slice %178 {offsets = [0, 96], sizes = [8, 32], strides = [1, 1]} : vector<8x128xf32> to vector<8x32xf32>
    %183 = arith.mulf %180, %152 : vector<8x32xf32>
    %184 = arith.mulf %179, %182 : vector<8x32xf32>
    %185 = arith.addf %183, %184 : vector<8x32xf32>
    %186 = math.tanh %185 : vector<8x32xf32>
    %187 = arith.mulf %181, %186 : vector<8x32xf32>
    %188 = tpu.concatenate %187, %187, %172, %172 in 1 : vector<8x32xf32>, vector<8x32xf32>, vector<8x32xf32>, vector<8x32xf32> -> vector<8x128xf32>
    %189 = arith.mulf %188, %1 : vector<8x128xf32>
    %c0_25 = arith.constant 0 : index
    %c0_26 = arith.constant 0 : index
    %190 = vector.load %arg2[%c0_25, %c0_26] : memref<128x256xf32, #tpu.memory_space<vmem>>, vector<128x256xf32>
    %cst_27 = arith.constant dense<0.000000e+00> : vector<8x256xf32>
    %191 = tpu.matmul %189, %190, %cst_27 {dimension_numbers = #tpu.dot_dimension_numbers<[1], [0], [0], [1], [0, 0, 1, 1], [], []>} : vector<8x128xf32>, vector<128x256xf32>, vector<8x256xf32> -> vector<8x256xf32>
    %192 = vector.extract_strided_slice %191 {offsets = [0, 128], sizes = [8, 128], strides = [1, 1]} : vector<8x256xf32> to vector<8x128xf32>
    %193 = arith.addf %192, %0 : vector<8x128xf32>
    %194 = math.tanh %193 : vector<8x128xf32>
    %195 = arith.mulf %2, %194 : vector<8x128xf32>
    %196 = arith.addf %195, %3 : vector<8x128xf32>
    %197 = vector.extract_strided_slice %196 {offsets = [0, 0], sizes = [8, 32], strides = [1, 1]} : vector<8x128xf32> to vector<8x32xf32>
    %198 = vector.extract_strided_slice %196 {offsets = [0, 32], sizes = [8, 32], strides = [1, 1]} : vector<8x128xf32> to vector<8x32xf32>
    %199 = vector.extract_strided_slice %196 {offsets = [0, 64], sizes = [8, 32], strides = [1, 1]} : vector<8x128xf32> to vector<8x32xf32>
    %200 = vector.extract_strided_slice %196 {offsets = [0, 96], sizes = [8, 32], strides = [1, 1]} : vector<8x128xf32> to vector<8x32xf32>
    %201 = arith.mulf %198, %170 : vector<8x32xf32>
    %202 = arith.mulf %197, %200 : vector<8x32xf32>
    %203 = arith.addf %201, %202 : vector<8x32xf32>
    %204 = math.tanh %203 : vector<8x32xf32>
    %205 = arith.mulf %199, %204 : vector<8x32xf32>
    %206 = vector.extract_strided_slice %191 {offsets = [0, 0], sizes = [8, 128], strides = [1, 1]} : vector<8x256xf32> to vector<8x128xf32>
    %207 = vector.extract_strided_slice %6 {offsets = [48, 0], sizes = [8, 128], strides = [1, 1]} : vector<64x128xf32> to vector<8x128xf32>
    %208 = arith.addf %206, %207 : vector<8x128xf32>
    %209 = math.tanh %208 : vector<8x128xf32>
    %210 = arith.mulf %2, %209 : vector<8x128xf32>
    %211 = arith.addf %210, %3 : vector<8x128xf32>
    %212 = vector.extract_strided_slice %211 {offsets = [0, 0], sizes = [8, 32], strides = [1, 1]} : vector<8x128xf32> to vector<8x32xf32>
    %213 = vector.extract_strided_slice %211 {offsets = [0, 32], sizes = [8, 32], strides = [1, 1]} : vector<8x128xf32> to vector<8x32xf32>
    %214 = vector.extract_strided_slice %211 {offsets = [0, 64], sizes = [8, 32], strides = [1, 1]} : vector<8x128xf32> to vector<8x32xf32>
    %215 = vector.extract_strided_slice %211 {offsets = [0, 96], sizes = [8, 32], strides = [1, 1]} : vector<8x128xf32> to vector<8x32xf32>
    %216 = arith.mulf %213, %185 : vector<8x32xf32>
    %217 = arith.mulf %212, %215 : vector<8x32xf32>
    %218 = arith.addf %216, %217 : vector<8x32xf32>
    %219 = math.tanh %218 : vector<8x32xf32>
    %220 = arith.mulf %214, %219 : vector<8x32xf32>
    %221 = tpu.concatenate %220, %220, %205, %205 in 1 : vector<8x32xf32>, vector<8x32xf32>, vector<8x32xf32>, vector<8x32xf32> -> vector<8x128xf32>
    %222 = arith.mulf %221, %1 : vector<8x128xf32>
    %c0_28 = arith.constant 0 : index
    %c0_29 = arith.constant 0 : index
    %223 = vector.load %arg2[%c0_28, %c0_29] : memref<128x256xf32, #tpu.memory_space<vmem>>, vector<128x256xf32>
    %cst_30 = arith.constant dense<0.000000e+00> : vector<8x256xf32>
    %224 = tpu.matmul %222, %223, %cst_30 {dimension_numbers = #tpu.dot_dimension_numbers<[1], [0], [0], [1], [0, 0, 1, 1], [], []>} : vector<8x128xf32>, vector<128x256xf32>, vector<8x256xf32> -> vector<8x256xf32>
    %225 = vector.extract_strided_slice %224 {offsets = [0, 128], sizes = [8, 128], strides = [1, 1]} : vector<8x256xf32> to vector<8x128xf32>
    %226 = arith.addf %225, %0 : vector<8x128xf32>
    %227 = math.tanh %226 : vector<8x128xf32>
    %228 = arith.mulf %2, %227 : vector<8x128xf32>
    %229 = arith.addf %228, %3 : vector<8x128xf32>
    %230 = vector.extract_strided_slice %229 {offsets = [0, 0], sizes = [8, 32], strides = [1, 1]} : vector<8x128xf32> to vector<8x32xf32>
    %231 = vector.extract_strided_slice %229 {offsets = [0, 32], sizes = [8, 32], strides = [1, 1]} : vector<8x128xf32> to vector<8x32xf32>
    %232 = vector.extract_strided_slice %229 {offsets = [0, 64], sizes = [8, 32], strides = [1, 1]} : vector<8x128xf32> to vector<8x32xf32>
    %233 = vector.extract_strided_slice %229 {offsets = [0, 96], sizes = [8, 32], strides = [1, 1]} : vector<8x128xf32> to vector<8x32xf32>
    %234 = arith.mulf %231, %203 : vector<8x32xf32>
    %235 = arith.mulf %230, %233 : vector<8x32xf32>
    %236 = arith.addf %234, %235 : vector<8x32xf32>
    %237 = math.tanh %236 : vector<8x32xf32>
    %238 = arith.mulf %232, %237 : vector<8x32xf32>
    %239 = vector.extract_strided_slice %224 {offsets = [0, 0], sizes = [8, 128], strides = [1, 1]} : vector<8x256xf32> to vector<8x128xf32>
    %240 = vector.extract_strided_slice %6 {offsets = [56, 0], sizes = [8, 128], strides = [1, 1]} : vector<64x128xf32> to vector<8x128xf32>
    %241 = arith.addf %239, %240 : vector<8x128xf32>
    %242 = math.tanh %241 : vector<8x128xf32>
    %243 = arith.mulf %2, %242 : vector<8x128xf32>
    %244 = arith.addf %243, %3 : vector<8x128xf32>
    %245 = vector.extract_strided_slice %244 {offsets = [0, 0], sizes = [8, 32], strides = [1, 1]} : vector<8x128xf32> to vector<8x32xf32>
    %246 = vector.extract_strided_slice %244 {offsets = [0, 32], sizes = [8, 32], strides = [1, 1]} : vector<8x128xf32> to vector<8x32xf32>
    %247 = vector.extract_strided_slice %244 {offsets = [0, 64], sizes = [8, 32], strides = [1, 1]} : vector<8x128xf32> to vector<8x32xf32>
    %248 = vector.extract_strided_slice %244 {offsets = [0, 96], sizes = [8, 32], strides = [1, 1]} : vector<8x128xf32> to vector<8x32xf32>
    %249 = arith.mulf %246, %218 : vector<8x32xf32>
    %250 = arith.mulf %245, %248 : vector<8x32xf32>
    %251 = arith.addf %249, %250 : vector<8x32xf32>
    %252 = math.tanh %251 : vector<8x32xf32>
    %253 = arith.mulf %247, %252 : vector<8x32xf32>
    %254 = tpu.concatenate %253, %253, %238, %238 in 1 : vector<8x32xf32>, vector<8x32xf32>, vector<8x32xf32>, vector<8x32xf32> -> vector<8x128xf32>
    %255 = arith.mulf %254, %1 : vector<8x128xf32>
    %c0_31 = arith.constant 0 : index
    %c0_32 = arith.constant 0 : index
    %256 = vector.load %arg2[%c0_31, %c0_32] : memref<128x256xf32, #tpu.memory_space<vmem>>, vector<128x256xf32>
    %cst_33 = arith.constant dense<0.000000e+00> : vector<8x256xf32>
    %257 = tpu.matmul %255, %256, %cst_33 {dimension_numbers = #tpu.dot_dimension_numbers<[1], [0], [0], [1], [0, 0, 1, 1], [], []>} : vector<8x128xf32>, vector<128x256xf32>, vector<8x256xf32> -> vector<8x256xf32>
    %258 = vector.extract_strided_slice %257 {offsets = [0, 128], sizes = [8, 128], strides = [1, 1]} : vector<8x256xf32> to vector<8x128xf32>
    %259 = arith.addf %258, %0 : vector<8x128xf32>
    %260 = math.tanh %259 : vector<8x128xf32>
    %261 = arith.mulf %2, %260 : vector<8x128xf32>
    %262 = arith.addf %261, %3 : vector<8x128xf32>
    %263 = vector.extract_strided_slice %262 {offsets = [0, 0], sizes = [8, 32], strides = [1, 1]} : vector<8x128xf32> to vector<8x32xf32>
    %264 = vector.extract_strided_slice %262 {offsets = [0, 32], sizes = [8, 32], strides = [1, 1]} : vector<8x128xf32> to vector<8x32xf32>
    %265 = vector.extract_strided_slice %262 {offsets = [0, 64], sizes = [8, 32], strides = [1, 1]} : vector<8x128xf32> to vector<8x32xf32>
    %266 = vector.extract_strided_slice %262 {offsets = [0, 96], sizes = [8, 32], strides = [1, 1]} : vector<8x128xf32> to vector<8x32xf32>
    %267 = arith.mulf %264, %236 : vector<8x32xf32>
    %268 = arith.mulf %263, %266 : vector<8x32xf32>
    %269 = arith.addf %267, %268 : vector<8x32xf32>
    %270 = math.tanh %269 : vector<8x32xf32>
    %271 = arith.mulf %265, %270 : vector<8x32xf32>
    %272 = vector.extract_strided_slice %271 {offsets = [4, 0], sizes = [4, 32], strides = [1, 1]} : vector<8x32xf32> to vector<4x32xf32>
    %273 = vector.extract_strided_slice %271 {offsets = [0, 0], sizes = [4, 32], strides = [1, 1]} : vector<8x32xf32> to vector<4x32xf32>
    %274 = tpu.concatenate %272, %273 in 0 : vector<4x32xf32>, vector<4x32xf32> -> vector<8x32xf32>
    %275 = tpu.concatenate %271, %274 in 1 : vector<8x32xf32>, vector<8x32xf32> -> vector<8x64xf32>
    %c40 = arith.constant 40 : index
    %c0_34 = arith.constant 0 : index
    %276 = vector.load %arg1[%c40, %c0_34] : memref<384x128xf32, #tpu.memory_space<vmem>>, vector<64x128xf32>
    %cst_35 = arith.constant dense<0.000000e+00> : vector<8x128xf32>
    %277 = tpu.matmul %275, %276, %cst_35 {dimension_numbers = #tpu.dot_dimension_numbers<[1], [0], [0], [1], [0, 0, 1, 1], [], []>} : vector<8x64xf32>, vector<64x128xf32>, vector<8x128xf32> -> vector<8x128xf32>
    %c360 = arith.constant 360 : index
    %c0_36 = arith.constant 0 : index
    %278 = vector.load %arg1[%c360, %c0_36] : memref<384x128xf32, #tpu.memory_space<vmem>>, vector<8x128xf32>
    %279 = arith.addf %277, %278 : vector<8x128xf32>
    %cst_37 = arith.constant 0.000000e+00 : f32
    %280 = vector.broadcast %cst_37 : f32 to vector<8x128xf32>
    %281 = arith.maximumf %279, %280 : vector<8x128xf32>
    %c104 = arith.constant 104 : index
    %c0_38 = arith.constant 0 : index
    %282 = vector.load %arg1[%c104, %c0_38] : memref<384x128xf32, #tpu.memory_space<vmem>>, vector<128x128xf32>
    %cst_39 = arith.constant dense<0.000000e+00> : vector<8x128xf32>
    %283 = tpu.matmul %281, %282, %cst_39 {dimension_numbers = #tpu.dot_dimension_numbers<[1], [0], [0], [1], [0, 0, 1, 1], [], []>} : vector<8x128xf32>, vector<128x128xf32>, vector<8x128xf32> -> vector<8x128xf32>
    %c368 = arith.constant 368 : index
    %c0_40 = arith.constant 0 : index
    %284 = vector.load %arg1[%c368, %c0_40] : memref<384x128xf32, #tpu.memory_space<vmem>>, vector<8x128xf32>
    %285 = arith.addf %283, %284 : vector<8x128xf32>
    %cst_41 = arith.constant 0.000000e+00 : f32
    %286 = vector.broadcast %cst_41 : f32 to vector<8x128xf32>
    %287 = arith.maximumf %285, %286 : vector<8x128xf32>
    %c232 = arith.constant 232 : index
    %c0_42 = arith.constant 0 : index
    %288 = vector.load %arg1[%c232, %c0_42] : memref<384x128xf32, #tpu.memory_space<vmem>>, vector<128x128xf32>
    %cst_43 = arith.constant dense<0.000000e+00> : vector<8x128xf32>
    %289 = tpu.matmul %287, %288, %cst_43 {dimension_numbers = #tpu.dot_dimension_numbers<[1], [0], [0], [1], [0, 0, 1, 1], [], []>} : vector<8x128xf32>, vector<128x128xf32>, vector<8x128xf32> -> vector<8x128xf32>
    %c376 = arith.constant 376 : index
    %c0_44 = arith.constant 0 : index
    %290 = vector.load %arg1[%c376, %c0_44] : memref<384x128xf32, #tpu.memory_space<vmem>>, vector<8x128xf32>
    %291 = arith.addf %289, %290 : vector<8x128xf32>
    %c0_45 = arith.constant 0 : index
    %c0_46 = arith.constant 0 : index
    %292 = vector.load %arg3[%c0_45, %c0_46] : memref<8x128xf32, #tpu.memory_space<vmem>>, vector<8x128xf32>
    tpu.vector_store %arg3[%c0_45, %c0_46], %291 {strides = array<i32>} : memref<8x128xf32, #tpu.memory_space<vmem>>, vector<8x128xf32>,
    return
  }
}

</mosaic_0001>

<llo_original>
// kernel: lstm_regression_forward.1
$region0: #{lstm_regression_forward.1}
  #allocation0 [shape = 'u32[]', space=smem, size = 0x4, offset = 0x4, fixed_abs, tag = 'smem constant byte address 0x4 - core index']
  #allocation1 [shape = 'u32[144,128]{1,0:T(1,128)}', space=vmem, size = 0x12000, scoped, tag = 'internal scratch']
  %s0 = inlined_call_operand.vmem [shape: f32[64,8], index: 0, kind: input, shape index: {}]
  %s1 = inlined_call_operand.hbm [shape: f32[384,128], index: 1, kind: input, shape index: {}]
  %s2 = inlined_call_operand.vmem [shape: f32[128,256], index: 2, kind: input, shape index: {}]
  %s3 = inlined_call_operand.vmem [shape: f32[8,128], index: 3, kind: output, shape index: {}]
  %s4 = sld [smem:[#allocation0]]
  $region26: #{lstm_regression_forward.1} parent=0
    _
  %s6 = ssub.s32 1, %s4
  %s7 = scalar_select 0, %s6, %s4
  $region1: #{lstm_regression_forward.1} parent=0
    #allocation2 [shape = 'u8[196608]{0}', space=vmem, size = 0x30000, scoped, tag = 'input window, operand 1, single buffered']
    #allocation3 [shape = 's32[1]{0}', space=sflag, size = 0x4, scoped, tag = 'scoped memory for lstm_regression_forward.1']
    %8 = vsyncpa [#allocation3], 0
    // Predicated region
    $region2: #{lstm_regression_forward.1} parent=1 // pred_check
      _
    $region3: #{lstm_regression_forward.1} parent=1 // pred_check_branch
      %10 = sbr.rel (0) target = $region5
    $region4: #{lstm_regression_forward.1} parent=1 // pred_region
      _
    $region5: #{lstm_regression_forward.1} parent=1 // pred_fallthru
      _
    // Predicated region
    $region6: #{lstm_regression_forward.1} parent=1 // pred_check
      _
    $region7: #{lstm_regression_forward.1} parent=1 // pred_check_branch
      %12 = sbr.rel (0) target = $region9
    $region8: #{lstm_regression_forward.1} parent=1 // pred_region
      %s14 = ssub.s32 6144, 6144
      %15 = vsyncadd [#allocation3], %s14
      %s16 = sshll.u32 [#allocation2], 4
      %s17 = int_to_ptr.vmem [resolvable:$true] %s16
      %22 = dma.hbm_to_vmem [thread:$0]  %s1, 6144, %s17, [#allocation3], 128, 128, 8
    $region9: #{lstm_regression_forward.1} parent=1 // pred_fallthru
      _
    // Predicated region
    $region10: #{lstm_regression_forward.1} parent=1 // pred_check
      _
    $region11: #{lstm_regression_forward.1} parent=1 // pred_check_branch
      %24 = sbr.rel (0) target = $region13
    $region12: #{lstm_regression_forward.1} parent=1 // pred_region
      _
    $region13: #{lstm_regression_forward.1} parent=1 // pred_fallthru
      _
    // Predicated region
    $region14: #{lstm_regression_forward.1} parent=1 // pred_check
      _
    $region15: #{lstm_regression_forward.1} parent=1 // pred_check_branch
      %26 = sbr.rel (0) target = $region17
    $region16: #{lstm_regression_forward.1} parent=1 // pred_region
      %27 = dma.done [#allocation3], 6144
    $region17: #{lstm_regression_forward.1} parent=1 // pred_fallthru
      _
    %v28 = vld [vmem:[#allocation2] sm:$0xff]
    %v29 = vld [vmem:[#allocation2 + $0x10] sm:$0xff]
    %v30 = vld [vmem:[#allocation2 + $0x18] sm:$0xff]
    %v31 = vld [vmem:[#allocation2 + $0x20] sm:$0xff]
    %v32 = vld [vmem:[%s0] sm:$0xff]
    %v33 = vld [vmem:[%s0 + $0x8] sm:$0xff]
    %v34 = vld [vmem:[%s0 + $0x10] sm:$0xff]
    %v35 = vld [vmem:[%s0 + $0x18] sm:$0xff]
    %v36 = vld [vmem:[%s0 + $0x20] sm:$0xff]
    %v37 = vld [vmem:[%s0 + $0x28] sm:$0xff]
    %v38 = vld [vmem:[%s0 + $0x30] sm:$0xff]
    %v39 = vld [vmem:[%s0 + $0x38] sm:$0xff]
    %v40 = vld [vmem:[#allocation2 + $0x8] sm:$0xff]
    %vm41 = vcmask 64512
    %v43 = vsel %vm41, %v32, 0
    %v46 = vsel %vm41, %v33, 0
    %v49 = vsel %vm41, %v34, 0
    %v52 = vsel %vm41, %v35, 0
    %v55 = vsel %vm41, %v36, 0
    %v58 = vsel %vm41, %v37, 0
    %v61 = vsel %vm41, %v38, 0
    %v64 = vsel %vm41, %v39, 0
    %66 = vmatprep.subr.mxu0 0.0
    %67 = vmatpush1.msra.mxu0 0.0
    %68 = vmatprep.subr.mxu0 0.0
    %69 = vmatpush1.msra.mxu0 0.0
    %70 = vmatprep.subr.mxu0 0.0
    %71 = vmatpush1.msra.mxu0 0.0
    %72 = vmatprep.subr.mxu0 0.0
    %73 = vmatpush1.msra.mxu0 0.0
    %74 = vmatprep.subr.mxu0 0.0
    %75 = vmatpush1.msra.mxu0 0.0
    %76 = vmatprep.subr.mxu0 0.0
    %77 = vmatpush1.msra.mxu0 0.0
    %78 = vmatprep.subr.mxu0 0.0
    %79 = vmatpush1.msra.mxu0 0.0
    %80 = vmatprep.subr.mxu0 0.0
    %81 = vmatpush1.msra.mxu0 0.0
    %82 = vmatprep.subr.mxu0 0.0
    %83 = vmatpush1.msra.mxu0 0.0
    %84 = vmatprep.subr.mxu0 0.0
    %85 = vmatpush1.msra.mxu0 0.0
    %86 = vmatprep.subr.mxu0 0.0
    %87 = vmatpush1.msra.mxu0 0.0
    %88 = vmatprep.subr.mxu0 0.0
    %89 = vmatpush1.msra.mxu0 0.0
    %90 = vmatprep.subr.mxu0 0.0
    %91 = vmatpush1.msra.mxu0 0.0
    %92 = vmatprep.subr.mxu0 0.0
    %93 = vmatpush1.msra.mxu0 0.0
    %94 = vmatprep.subr.mxu0 0.0
    %95 = vmatpush1.msra.mxu0 0.0
    %96 = vmatprep.subr.mxu0 0.0
    %97 = vmatpush1.msra.mxu0 %v40
    %98 = vmatprep.subr.mxu0 0.0
    %99 = vmatpush2.msra.mxu0 0.0
    %100 = vmatprep.subr.mxu0 0.0
    %101 = vmatpush2.msra.mxu0 0.0
    %102 = vmatprep.subr.mxu0 0.0
    %103 = vmatpush2.msra.mxu0 0.0
    %104 = vmatprep.subr.mxu0 0.0
    %105 = vmatpush2.msra.mxu0 0.0
    %106 = vmatprep.subr.mxu0 0.0
    %107 = vmatpush2.msra.mxu0 0.0
    %108 = vmatprep.subr.mxu0 0.0
    %109 = vmatpush2.msra.mxu0 0.0
    %110 = vmatprep.subr.mxu0 0.0
    %111 = vmatpush2.msra.mxu0 0.0
    %112 = vmatprep.subr.mxu0 0.0
    %113 = vmatpush2.msra.mxu0 0.0
    %114 = vmatprep.subr.mxu0 0.0
    %115 = vmatpush2.msra.mxu0 0.0
    %116 = vmatprep.subr.mxu0 0.0
    %117 = vmatpush2.msra.mxu0 0.0
    %118 = vmatprep.subr.mxu0 0.0
    %119 = vmatpush2.msra.mxu0 0.0
    %120 = vmatprep.subr.mxu0 0.0
    %121 = vmatpush2.msra.mxu0 0.0
    %122 = vmatprep.subr.mxu0 0.0
    %123 = vmatpush2.msra.mxu0 0.0
    %124 = vmatprep.subr.mxu0 0.0
    %125 = vmatpush2.msra.mxu0 0.0
    %126 = vmatprep.subr.mxu0 0.0
    %127 = vmatpush2.msra.mxu0 0.0
    %128 = vmatprep.subr.mxu0 0.0
    %129 = vmatpush2.msra.mxu0 0.0
    %130 = vmatprep.mubr.f32.mxu0 0.0
    %131 = vmatmul.mubr.f32.gmra.mxu0 %v43
    %v132 = vpop.f32.mrf.mxu0
    %v133 = vadd.f32 0.0, %v132
    %v134 = vpop.f32.mrf.mxu0
    %135 = vmatprep.mubr.f32.mxu0 0.0
    %136 = vmatmul.mubr.f32.gmra.mxu0 %v46
    %v137 = vpop.f32.mrf.mxu0
    %v138 = vadd.f32 0.0, %v137
    %v139 = vpop.f32.mrf.mxu0
    %140 = vmatprep.mubr.f32.mxu0 0.0
    %141 = vmatmul.mubr.f32.gmra.mxu0 %v49
    %v142 = vpop.f32.mrf.mxu0
    %v143 = vadd.f32 0.0, %v142
    %v144 = vpop.f32.mrf.mxu0
    %145 = vmatprep.mubr.f32.mxu0 0.0
    %146 = vmatmul.mubr.f32.gmra.mxu0 %v52
    %v147 = vpop.f32.mrf.mxu0
    %v148 = vadd.f32 0.0, %v147
    %v149 = vpop.f32.mrf.mxu0
    %150 = vmatprep.mubr.f32.mxu0 0.0
    %151 = vmatmul.mubr.f32.gmra.mxu0 %v55
    %v152 = vpop.f32.mrf.mxu0
    %v153 = vadd.f32 0.0, %v152
    %v154 = vpop.f32.mrf.mxu0
    %155 = vmatprep.mubr.f32.mxu0 0.0
    %156 = vmatmul.mubr.f32.gmra.mxu0 %v58
    %v157 = vpop.f32.mrf.mxu0
    %v158 = vadd.f32 0.0, %v157
    %v159 = vpop.f32.mrf.mxu0
    %160 = vmatprep.mubr.f32.mxu0 0.0
    %161 = vmatmul.mubr.f32.gmra.mxu0 %v61
    %v162 = vpop.f32.mrf.mxu0
    %v163 = vadd.f32 0.0, %v162
    %v164 = vpop.f32.mrf.mxu0
    %165 = vmatprep.mubr.f32.mxu0 0.0
    %166 = vmatmul.mubr.f32.gmra.mxu0 %v64
    %v167 = vpop.f32.mrf.mxu0
    %v168 = vadd.f32 0.0, %v167
    %v169 = vpop.f32.mrf.mxu0
    %170 = vdwg.mxu0
    %v171 = vtanh.pop %v133
    %v172 = vmul.f32 %v30, %v171
    %v173 = vadd.f32 %v172, %v31
    %v174 = vmul.f32 %v173, 0.0
    %176 = vrot.lane.b32.xlu0 %v173, 32
    %v177 = vpop.permute.xlu0 %176
    %v179 = vmul.f32 %v173, %v177
    %181 = vrot.lane.b32.xlu0 %v179, 32
    %v182 = vpop.permute.xlu0 %181
    %v184 = vadd.f32 %v174, %v182
    %v185 = vtanh.pop %v184
    %187 = vrot.lane.b32.xlu0 %v185, 32
    %v188 = vpop.permute.xlu0 %187
    %v190 = vmul.f32 %v173, %v188
    %192 = vrot.lane.b32.xlu0 %v190, 64
    %v193 = vpop.permute.xlu0 %192
    %195 = vrot.lane.b32.xlu0 %v190, 96
    %v196 = vpop.permute.xlu0 %195
    %vm198 = vcmask 261120
    %v199 = vsel %vm198, %v193, %v196
    %vm200 = vcmask 523264
    %v201 = vsel %vm200, %v199, 0.0
    %vm202 = vcmask 785408
    %v203 = vsel %vm202, %v201, 0.0
    %v204 = vmul.f32 %v203, %v29
    %v205 = vld [vmem:[%s2] sm:$0xff]
    %v206 = vld [vmem:[%s2 + $0x8] sm:$0xff]
    %v207 = vld [vmem:[%s2 + $0x10] sm:$0xff]
    %v208 = vld [vmem:[%s2 + $0x18] sm:$0xff]
    %v209 = vld [vmem:[%s2 + $0x20] sm:$0xff]
    %v210 = vld [vmem:[%s2 + $0x28] sm:$0xff]
    %v211 = vld [vmem:[%s2 + $0x30] sm:$0xff]
    %v212 = vld [vmem:[%s2 + $0x38] sm:$0xff]
    %v213 = vld [vmem:[%s2 + $0x40] sm:$0xff]
    %v214 = vld [vmem:[%s2 + $0x48] sm:$0xff]
    %v215 = vld [vmem:[%s2 + $0x50] sm:$0xff]
    %v216 = vld [vmem:[%s2 + $0x58] sm:$0xff]
    %v217 = vld [vmem:[%s2 + $0x60] sm:$0xff]
    %v218 = vld [vmem:[%s2 + $0x68] sm:$0xff]
    %v219 = vld [vmem:[%s2 + $0x70] sm:$0xff]
    %v220 = vld [vmem:[%s2 + $0x78] sm:$0xff]
    %v221 = vld [vmem:[%s2 + $0x80] sm:$0xff]
    %v222 = vld [vmem:[%s2 + $0x88] sm:$0xff]
    %v223 = vld [vmem:[%s2 + $0x90] sm:$0xff]
    %v224 = vld [vmem:[%s2 + $0x98] sm:$0xff]
    %v225 = vld [vmem:[%s2 + $0xa0] sm:$0xff]
    %v226 = vld [vmem:[%s2 + $0xa8] sm:$0xff]
    %v227 = vld [vmem:[%s2 + $0xb0] sm:$0xff]
    %v228 = vld [vmem:[%s2 + $0xb8] sm:$0xff]
    %v229 = vld [vmem:[%s2 + $0xc0] sm:$0xff]
    %v230 = vld [vmem:[%s2 + $0xc8] sm:$0xff]
    %v231 = vld [vmem:[%s2 + $0xd0] sm:$0xff]
    %v232 = vld [vmem:[%s2 + $0xd8] sm:$0xff]
    %v233 = vld [vmem:[%s2 + $0xe0] sm:$0xff]
    %v234 = vld [vmem:[%s2 + $0xe8] sm:$0xff]
    %v235 = vld [vmem:[%s2 + $0xf0] sm:$0xff]
    %v236 = vld [vmem:[%s2 + $0xf8] sm:$0xff]
    %237 = vmatprep.subr.mxu0 %v236
    %238 = vmatpush1.msra.mxu0 %v235
    %239 = vmatprep.subr.mxu0 %v234
    %240 = vmatpush1.msra.mxu0 %v233
    %241 = vmatprep.subr.mxu0 %v232
    %242 = vmatpush1.msra.mxu0 %v231
    %243 = vmatprep.subr.mxu0 %v230
    %244 = vmatpush1.msra.mxu0 %v229
    %245 = vmatprep.subr.mxu0 %v228
    %246 = vmatpush1.msra.mxu0 %v227
    %247 = vmatprep.subr.mxu0 %v226
    %248 = vmatpush1.msra.mxu0 %v225
    %249 = vmatprep.subr.mxu0 %v224
    %250 = vmatpush1.msra.mxu0 %v223
    %251 = vmatprep.subr.mxu0 %v222
    %252 = vmatpush1.msra.mxu0 %v221
    %253 = vmatprep.subr.mxu0 %v220
    %254 = vmatpush1.msra.mxu0 %v219
    %255 = vmatprep.subr.mxu0 %v218
    %256 = vmatpush1.msra.mxu0 %v217
    %257 = vmatprep.subr.mxu0 %v216
    %258 = vmatpush1.msra.mxu0 %v215
    %259 = vmatprep.subr.mxu0 %v214
    %260 = vmatpush1.msra.mxu0 %v213
    %261 = vmatprep.subr.mxu0 %v212
    %262 = vmatpush1.msra.mxu0 %v211
    %263 = vmatprep.subr.mxu0 %v210
    %264 = vmatpush1.msra.mxu0 %v209
    %265 = vmatprep.subr.mxu0 %v208
    %266 = vmatpush1.msra.mxu0 %v207
    %267 = vmatprep.subr.mxu0 %v206
    %268 = vmatpush1.msra.mxu0 %v205
    %269 = vmatprep.subr.mxu0 0.0
    %270 = vmatpush2.msra.mxu0 0.0
    %271 = vmatprep.subr.mxu0 0.0
    %272 = vmatpush2.msra.mxu0 0.0
    %273 = vmatprep.subr.mxu0 0.0
    %274 = vmatpush2.msra.mxu0 0.0
    %275 = vmatprep.subr.mxu0 0.0
    %276 = vmatpush2.msra.mxu0 0.0
    %277 = vmatprep.subr.mxu0 0.0
    %278 = vmatpush2.msra.mxu0 0.0
    %279 = vmatprep.subr.mxu0 0.0
    %280 = vmatpush2.msra.mxu0 0.0
    %281 = vmatprep.subr.mxu0 0.0
    %282 = vmatpush2.msra.mxu0 0.0
    %283 = vmatprep.subr.mxu0 0.0
    %284 = vmatpush2.msra.mxu0 0.0
    %285 = vmatprep.subr.mxu0 0.0
    %286 = vmatpush2.msra.mxu0 0.0
    %287 = vmatprep.subr.mxu0 0.0
    %288 = vmatpush2.msra.mxu0 0.0
    %289 = vmatprep.subr.mxu0 0.0
    %290 = vmatpush2.msra.mxu0 0.0
    %291 = vmatprep.subr.mxu0 0.0
    %292 = vmatpush2.msra.mxu0 0.0
    %293 = vmatprep.subr.mxu0 0.0
    %294 = vmatpush2.msra.mxu0 0.0
    %295 = vmatprep.subr.mxu0 0.0
    %296 = vmatpush2.msra.mxu0 0.0
    %297 = vmatprep.subr.mxu0 0.0
    %298 = vmatpush2.msra.mxu0 0.0
    %299 = vmatprep.subr.mxu0 0.0
    %300 = vmatpush2.msra.mxu0 0.0
    %301 = vmatprep.mubr.f32.mxu0 0.0
    %302 = vmatmul.mubr.f32.gmra.mxu0 %v204
    %v303 = vpop.f32.mrf.mxu0
    %v304 = vadd.f32 0.0, %v303
    %v305 = vpop.f32.mrf.mxu0
    %v306 = vadd.f32 0.0, %v305
    %307 = vdwg.mxu0
    %v308 = vadd.f32 %v306, %v28
    %v309 = vtanh.pop %v308
    %v310 = vmul.f32 %v30, %v309
    %v311 = vadd.f32 %v310, %v31
    %v312 = vmul.f32 %v311, 0.0
    %314 = vrot.lane.b32.xlu0 %v311, 32
    %v315 = vpop.permute.xlu0 %314
    %v317 = vmul.f32 %v311, %v315
    %319 = vrot.lane.b32.xlu0 %v317, 32
    %v320 = vpop.permute.xlu0 %319
    %v322 = vadd.f32 %v312, %v320
    %v323 = vtanh.pop %v322
    %325 = vrot.lane.b32.xlu0 %v323, 32
    %v326 = vpop.permute.xlu0 %325
    %v328 = vmul.f32 %v311, %v326
    %v329 = vadd.f32 %v304, %v138
    %v330 = vtanh.pop %v329
    %v331 = vmul.f32 %v30, %v330
    %v332 = vadd.f32 %v331, %v31
    %v333 = vmul.f32 %v332, %v184
    %335 = vrot.lane.b32.xlu0 %v332, 32
    %v336 = vpop.permute.xlu0 %335
    %v338 = vmul.f32 %v332, %v336
    %340 = vrot.lane.b32.xlu0 %v338, 32
    %v341 = vpop.permute.xlu0 %340
    %v343 = vadd.f32 %v333, %v341
    %v344 = vtanh.pop %v343
    %346 = vrot.lane.b32.xlu0 %v344, 32
    %v347 = vpop.permute.xlu0 %346
    %v349 = vmul.f32 %v332, %v347
    %351 = vrot.lane.b32.xlu0 %v349, 64
    %v352 = vpop.permute.xlu0 %351
    %354 = vrot.lane.b32.xlu0 %v349, 96
    %v355 = vpop.permute.xlu0 %354
    %358 = vrot.lane.b32.xlu0 %v328, 32
    %v359 = vpop.permute.xlu0 %358
    %v361 = vsel %vm198, %v352, %v355
    %v362 = vsel %vm200, %v361, %v328
    %v363 = vsel %vm202, %v362, %v359
    %v364 = vmul.f32 %v363, %v29
    %365 = vmatprep.subr.mxu0 %v236
    %366 = vmatpush1.msra.mxu0 %v235
    %367 = vmatprep.subr.mxu0 %v234
    %368 = vmatpush1.msra.mxu0 %v233
    %369 = vmatprep.subr.mxu0 %v232
    %370 = vmatpush1.msra.mxu0 %v231
    %371 = vmatprep.subr.mxu0 %v230
    %372 = vmatpush1.msra.mxu0 %v229
    %373 = vmatprep.subr.mxu0 %v228
    %374 = vmatpush1.msra.mxu0 %v227
    %375 = vmatprep.subr.mxu0 %v226
    %376 = vmatpush1.msra.mxu0 %v225
    %377 = vmatprep.subr.mxu0 %v224
    %378 = vmatpush1.msra.mxu0 %v223
    %379 = vmatprep.subr.mxu0 %v222
    %380 = vmatpush1.msra.mxu0 %v221
    %381 = vmatprep.subr.mxu0 %v220
    %382 = vmatpush1.msra.mxu0 %v219
    %383 = vmatprep.subr.mxu0 %v218
    %384 = vmatpush1.msra.mxu0 %v217
    %385 = vmatprep.subr.mxu0 %v216
    %386 = vmatpush1.msra.mxu0 %v215
    %387 = vmatprep.subr.mxu0 %v214
    %388 = vmatpush1.msra.mxu0 %v213
    %389 = vmatprep.subr.mxu0 %v212
    %390 = vmatpush1.msra.mxu0 %v211
    %391 = vmatprep.subr.mxu0 %v210
    %392 = vmatpush1.msra.mxu0 %v209
    %393 = vmatprep.subr.mxu0 %v208
    %394 = vmatpush1.msra.mxu0 %v207
    %395 = vmatprep.subr.mxu0 %v206
    %396 = vmatpush1.msra.mxu0 %v205
    %397 = vmatprep.subr.mxu0 0.0
    %398 = vmatpush2.msra.mxu0 0.0
    %399 = vmatprep.subr.mxu0 0.0
    %400 = vmatpush2.msra.mxu0 0.0
    %401 = vmatprep.subr.mxu0 0.0
    %402 = vmatpush2.msra.mxu0 0.0
    %403 = vmatprep.subr.mxu0 0.0
    %404 = vmatpush2.msra.mxu0 0.0
    %405 = vmatprep.subr.mxu0 0.0
    %406 = vmatpush2.msra.mxu0 0.0
    %407 = vmatprep.subr.mxu0 0.0
    %408 = vmatpush2.msra.mxu0 0.0
    %409 = vmatprep.subr.mxu0 0.0
    %410 = vmatpush2.msra.mxu0 0.0
    %411 = vmatprep.subr.mxu0 0.0
    %412 = vmatpush2.msra.mxu0 0.0
    %413 = vmatprep.subr.mxu0 0.0
    %414 = vmatpush2.msra.mxu0 0.0
    %415 = vmatprep.subr.mxu0 0.0
    %416 = vmatpush2.msra.mxu0 0.0
    %417 = vmatprep.subr.mxu0 0.0
    %418 = vmatpush2.msra.mxu0 0.0
    %419 = vmatprep.subr.mxu0 0.0
    %420 = vmatpush2.msra.mxu0 0.0
    %421 = vmatprep.subr.mxu0 0.0
    %422 = vmatpush2.msra.mxu0 0.0
    %423 = vmatprep.subr.mxu0 0.0
    %424 = vmatpush2.msra.mxu0 0.0
    %425 = vmatprep.subr.mxu0 0.0
    %426 = vmatpush2.msra.mxu0 0.0
    %427 = vmatprep.subr.mxu0 0.0
    %428 = vmatpush2.msra.mxu0 0.0
    %429 = vmatprep.mubr.f32.mxu0 0.0
    %430 = vmatmul.mubr.f32.gmra.mxu0 %v364
    %v431 = vpop.f32.mrf.mxu0
    %v432 = vadd.f32 0.0, %v431
    %v433 = vpop.f32.mrf.mxu0
    %v434 = vadd.f32 0.0, %v433
    %435 = vdwg.mxu0
    %v436 = vadd.f32 %v434, %v28
    %v437 = vtanh.pop %v436
    %v438 = vmul.f32 %v30, %v437
    %v439 = vadd.f32 %v438, %v31
    %v440 = vmul.f32 %v439, %v322
    %442 = vrot.lane.b32.xlu0 %v439, 32
    %v443 = vpop.permute.xlu0 %442
    %v445 = vmul.f32 %v439, %v443
    %447 = vrot.lane.b32.xlu0 %v445, 32
    %v448 = vpop.permute.xlu0 %447
    %v450 = vadd.f32 %v440, %v448
    %v451 = vtanh.pop %v450
    %453 = vrot.lane.b32.xlu0 %v451, 32
    %v454 = vpop.permute.xlu0 %453
    %v456 = vmul.f32 %v439, %v454
    %v457 = vadd.f32 %v432, %v143
    %v458 = vtanh.pop %v457
    %v459 = vmul.f32 %v30, %v458
    %v460 = vadd.f32 %v459, %v31
    %v461 = vmul.f32 %v460, %v343
    %463 = vrot.lane.b32.xlu0 %v460, 32
    %v464 = vpop.permute.xlu0 %463
    %v466 = vmul.f32 %v460, %v464
    %468 = vrot.lane.b32.xlu0 %v466, 32
    %v469 = vpop.permute.xlu0 %468
    %v471 = vadd.f32 %v461, %v469
    %v472 = vtanh.pop %v471
    %474 = vrot.lane.b32.xlu0 %v472, 32
    %v475 = vpop.permute.xlu0 %474
    %v477 = vmul.f32 %v460, %v475
    %479 = vrot.lane.b32.xlu0 %v477, 64
    %v480 = vpop.permute.xlu0 %479
    %482 = vrot.lane.b32.xlu0 %v477, 96
    %v483 = vpop.permute.xlu0 %482
    %486 = vrot.lane.b32.xlu0 %v456, 32
    %v487 = vpop.permute.xlu0 %486
    %v489 = vsel %vm198, %v480, %v483
    %v490 = vsel %vm200, %v489, %v456
    %v491 = vsel %vm202, %v490, %v487
    %v492 = vmul.f32 %v491, %v29
    %493 = vmatprep.subr.mxu0 %v236
    %494 = vmatpush1.msra.mxu0 %v235
    %495 = vmatprep.subr.mxu0 %v234
    %496 = vmatpush1.msra.mxu0 %v233
    %497 = vmatprep.subr.mxu0 %v232
    %498 = vmatpush1.msra.mxu0 %v231
    %499 = vmatprep.subr.mxu0 %v230
    %500 = vmatpush1.msra.mxu0 %v229
    %501 = vmatprep.subr.mxu0 %v228
    %502 = vmatpush1.msra.mxu0 %v227
    %503 = vmatprep.subr.mxu0 %v226
    %504 = vmatpush1.msra.mxu0 %v225
    %505 = vmatprep.subr.mxu0 %v224
    %506 = vmatpush1.msra.mxu0 %v223
    %507 = vmatprep.subr.mxu0 %v222
    %508 = vmatpush1.msra.mxu0 %v221
    %509 = vmatprep.subr.mxu0 %v220
    %510 = vmatpush1.msra.mxu0 %v219
    %511 = vmatprep.subr.mxu0 %v218
    %512 = vmatpush1.msra.mxu0 %v217
    %513 = vmatprep.subr.mxu0 %v216
    %514 = vmatpush1.msra.mxu0 %v215
    %515 = vmatprep.subr.mxu0 %v214
    %516 = vmatpush1.msra.mxu0 %v213
    %517 = vmatprep.subr.mxu0 %v212
    %518 = vmatpush1.msra.mxu0 %v211
    %519 = vmatprep.subr.mxu0 %v210
    %520 = vmatpush1.msra.mxu0 %v209
    %521 = vmatprep.subr.mxu0 %v208
    %522 = vmatpush1.msra.mxu0 %v207
    %523 = vmatprep.subr.mxu0 %v206
    %524 = vmatpush1.msra.mxu0 %v205
    %525 = vmatprep.subr.mxu0 0.0
    %526 = vmatpush2.msra.mxu0 0.0
    %527 = vmatprep.subr.mxu0 0.0
    %528 = vmatpush2.msra.mxu0 0.0
    %529 = vmatprep.subr.mxu0 0.0
    %530 = vmatpush2.msra.mxu0 0.0
    %531 = vmatprep.subr.mxu0 0.0
    %532 = vmatpush2.msra.mxu0 0.0
    %533 = vmatprep.subr.mxu0 0.0
    %534 = vmatpush2.msra.mxu0 0.0
    %535 = vmatprep.subr.mxu0 0.0
    %536 = vmatpush2.msra.mxu0 0.0
    %537 = vmatprep.subr.mxu0 0.0
    %538 = vmatpush2.msra.mxu0 0.0
    %539 = vmatprep.subr.mxu0 0.0
    %540 = vmatpush2.msra.mxu0 0.0
    %541 = vmatprep.subr.mxu0 0.0
    %542 = vmatpush2.msra.mxu0 0.0
    %543 = vmatprep.subr.mxu0 0.0
    %544 = vmatpush2.msra.mxu0 0.0
    %545 = vmatprep.subr.mxu0 0.0
    %546 = vmatpush2.msra.mxu0 0.0
    %547 = vmatprep.subr.mxu0 0.0
    %548 = vmatpush2.msra.mxu0 0.0
    %549 = vmatprep.subr.mxu0 0.0
    %550 = vmatpush2.msra.mxu0 0.0
    %551 = vmatprep.subr.mxu0 0.0
    %552 = vmatpush2.msra.mxu0 0.0
    %553 = vmatprep.subr.mxu0 0.0
    %554 = vmatpush2.msra.mxu0 0.0
    %555 = vmatprep.subr.mxu0 0.0
    %556 = vmatpush2.msra.mxu0 0.0
    %557 = vmatprep.mubr.f32.mxu0 0.0
    %558 = vmatmul.mubr.f32.gmra.mxu0 %v492
    %v559 = vpop.f32.mrf.mxu0
    %v560 = vadd.f32 0.0, %v559
    %v561 = vpop.f32.mrf.mxu0
    %v562 = vadd.f32 0.0, %v561
    %563 = vdwg.mxu0
    %v564 = vadd.f32 %v562, %v28
    %v565 = vtanh.pop %v564
    %v566 = vmul.f32 %v30, %v565
    %v567 = vadd.f32 %v566, %v31
    %v568 = vmul.f32 %v567, %v450
    %570 = vrot.lane.b32.xlu0 %v567, 32
    %v571 = vpop.permute.xlu0 %570
    %v573 = vmul.f32 %v567, %v571
    %575 = vrot.lane.b32.xlu0 %v573, 32
    %v576 = vpop.permute.xlu0 %575
    %v578 = vadd.f32 %v568, %v576
    %v579 = vtanh.pop %v578
    %581 = vrot.lane.b32.xlu0 %v579, 32
    %v582 = vpop.permute.xlu0 %581
    %v584 = vmul.f32 %v567, %v582
    %v585 = vadd.f32 %v560, %v148
    %v586 = vtanh.pop %v585
    %v587 = vmul.f32 %v30, %v586
    %v588 = vadd.f32 %v587, %v31
    %v589 = vmul.f32 %v588, %v471
    %591 = vrot.lane.b32.xlu0 %v588, 32
    %v592 = vpop.permute.xlu0 %591
    %v594 = vmul.f32 %v588, %v592
    %596 = vrot.lane.b32.xlu0 %v594, 32
    %v597 = vpop.permute.xlu0 %596
    %v599 = vadd.f32 %v589, %v597
    %v600 = vtanh.pop %v599
    %602 = vrot.lane.b32.xlu0 %v600, 32
    %v603 = vpop.permute.xlu0 %602
    %v605 = vmul.f32 %v588, %v603
    %607 = vrot.lane.b32.xlu0 %v605, 64
    %v608 = vpop.permute.xlu0 %607
    %610 = vrot.lane.b32.xlu0 %v605, 96
    %v611 = vpop.permute.xlu0 %610
    %614 = vrot.lane.b32.xlu0 %v584, 32
    %v615 = vpop.permute.xlu0 %614
    %v617 = vsel %vm198, %v608, %v611
    %v618 = vsel %vm200, %v617, %v584
    %v619 = vsel %vm202, %v618, %v615
    %v620 = vmul.f32 %v619, %v29
    %621 = vmatprep.subr.mxu0 %v236
    %622 = vmatpush1.msra.mxu0 %v235
    %623 = vmatprep.subr.mxu0 %v234
    %624 = vmatpush1.msra.mxu0 %v233
    %625 = vmatprep.subr.mxu0 %v232
    %626 = vmatpush1.msra.mxu0 %v231
    %627 = vmatprep.subr.mxu0 %v230
    %628 = vmatpush1.msra.mxu0 %v229
    %629 = vmatprep.subr.mxu0 %v228
    %630 = vmatpush1.msra.mxu0 %v227
    %631 = vmatprep.subr.mxu0 %v226
    %632 = vmatpush1.msra.mxu0 %v225
    %633 = vmatprep.subr.mxu0 %v224
    %634 = vmatpush1.msra.mxu0 %v223
    %635 = vmatprep.subr.mxu0 %v222
    %636 = vmatpush1.msra.mxu0 %v221
    %637 = vmatprep.subr.mxu0 %v220
    %638 = vmatpush1.msra.mxu0 %v219
    %639 = vmatprep.subr.mxu0 %v218
    %640 = vmatpush1.msra.mxu0 %v217
    %641 = vmatprep.subr.mxu0 %v216
    %642 = vmatpush1.msra.mxu0 %v215
    %643 = vmatprep.subr.mxu0 %v214
    %644 = vmatpush1.msra.mxu0 %v213
    %645 = vmatprep.subr.mxu0 %v212
    %646 = vmatpush1.msra.mxu0 %v211
    %647 = vmatprep.subr.mxu0 %v210
    %648 = vmatpush1.msra.mxu0 %v209
    %649 = vmatprep.subr.mxu0 %v208
    %650 = vmatpush1.msra.mxu0 %v207
    %651 = vmatprep.subr.mxu0 %v206
    %652 = vmatpush1.msra.mxu0 %v205
    %653 = vmatprep.subr.mxu0 0.0
    %654 = vmatpush2.msra.mxu0 0.0
    %655 = vmatprep.subr.mxu0 0.0
    %656 = vmatpush2.msra.mxu0 0.0
    %657 = vmatprep.subr.mxu0 0.0
    %658 = vmatpush2.msra.mxu0 0.0
    %659 = vmatprep.subr.mxu0 0.0
    %660 = vmatpush2.msra.mxu0 0.0
    %661 = vmatprep.subr.mxu0 0.0
    %662 = vmatpush2.msra.mxu0 0.0
    %663 = vmatprep.subr.mxu0 0.0
    %664 = vmatpush2.msra.mxu0 0.0
    %665 = vmatprep.subr.mxu0 0.0
    %666 = vmatpush2.msra.mxu0 0.0
    %667 = vmatprep.subr.mxu0 0.0
    %668 = vmatpush2.msra.mxu0 0.0
    %669 = vmatprep.subr.mxu0 0.0
    %670 = vmatpush2.msra.mxu0 0.0
    %671 = vmatprep.subr.mxu0 0.0
    %672 = vmatpush2.msra.mxu0 0.0
    %673 = vmatprep.subr.mxu0 0.0
    %674 = vmatpush2.msra.mxu0 0.0
    %675 = vmatprep.subr.mxu0 0.0
    %676 = vmatpush2.msra.mxu0 0.0
    %677 = vmatprep.subr.mxu0 0.0
    %678 = vmatpush2.msra.mxu0 0.0
    %679 = vmatprep.subr.mxu0 0.0
    %680 = vmatpush2.msra.mxu0 0.0
    %681 = vmatprep.subr.mxu0 0.0
    %682 = vmatpush2.msra.mxu0 0.0
    %683 = vmatprep.subr.mxu0 0.0
    %684 = vmatpush2.msra.mxu0 0.0
    %685 = vmatprep.mubr.f32.mxu0 0.0
    %686 = vmatmul.mubr.f32.gmra.mxu0 %v620
    %v687 = vpop.f32.mrf.mxu0
    %v688 = vadd.f32 0.0, %v687
    %v689 = vpop.f32.mrf.mxu0
    %v690 = vadd.f32 0.0, %v689
    %691 = vdwg.mxu0
    %v692 = vadd.f32 %v690, %v28
    %v693 = vtanh.pop %v692
    %v694 = vmul.f32 %v30, %v693
    %v695 = vadd.f32 %v694, %v31
    %v696 = vmul.f32 %v695, %v578
    %698 = vrot.lane.b32.xlu0 %v695, 32
    %v699 = vpop.permute.xlu0 %698
    %v701 = vmul.f32 %v695, %v699
    %703 = vrot.lane.b32.xlu0 %v701, 32
    %v704 = vpop.permute.xlu0 %703
    %v706 = vadd.f32 %v696, %v704
    %v707 = vtanh.pop %v706
    %709 = vrot.lane.b32.xlu0 %v707, 32
    %v710 = vpop.permute.xlu0 %709
    %v712 = vmul.f32 %v695, %v710
    %v713 = vadd.f32 %v688, %v153
    %v714 = vtanh.pop %v713
    %v715 = vmul.f32 %v30, %v714
    %v716 = vadd.f32 %v715, %v31
    %v717 = vmul.f32 %v716, %v599
    %719 = vrot.lane.b32.xlu0 %v716, 32
    %v720 = vpop.permute.xlu0 %719
    %v722 = vmul.f32 %v716, %v720
    %724 = vrot.lane.b32.xlu0 %v722, 32
    %v725 = vpop.permute.xlu0 %724
    %v727 = vadd.f32 %v717, %v725
    %v728 = vtanh.pop %v727
    %730 = vrot.lane.b32.xlu0 %v728, 32
    %v731 = vpop.permute.xlu0 %730
    %v733 = vmul.f32 %v716, %v731
    %735 = vrot.lane.b32.xlu0 %v733, 64
    %v736 = vpop.permute.xlu0 %735
    %738 = vrot.lane.b32.xlu0 %v733, 96
    %v739 = vpop.permute.xlu0 %738
    %742 = vrot.lane.b32.xlu0 %v712, 32
    %v743 = vpop.permute.xlu0 %742
    %v745 = vsel %vm198, %v736, %v739
    %v746 = vsel %vm200, %v745, %v712
    %v747 = vsel %vm202, %v746, %v743
    %v748 = vmul.f32 %v747, %v29
    %749 = vmatprep.subr.mxu0 %v236
    %750 = vmatpush1.msra.mxu0 %v235
    %751 = vmatprep.subr.mxu0 %v234
    %752 = vmatpush1.msra.mxu0 %v233
    %753 = vmatprep.subr.mxu0 %v232
    %754 = vmatpush1.msra.mxu0 %v231
    %755 = vmatprep.subr.mxu0 %v230
    %756 = vmatpush1.msra.mxu0 %v229
    %757 = vmatprep.subr.mxu0 %v228
    %758 = vmatpush1.msra.mxu0 %v227
    %759 = vmatprep.subr.mxu0 %v226
    %760 = vmatpush1.msra.mxu0 %v225
    %761 = vmatprep.subr.mxu0 %v224
    %762 = vmatpush1.msra.mxu0 %v223
    %763 = vmatprep.subr.mxu0 %v222
    %764 = vmatpush1.msra.mxu0 %v221
    %765 = vmatprep.subr.mxu0 %v220
    %766 = vmatpush1.msra.mxu0 %v219
    %767 = vmatprep.subr.mxu0 %v218
    %768 = vmatpush1.msra.mxu0 %v217
    %769 = vmatprep.subr.mxu0 %v216
    %770 = vmatpush1.msra.mxu0 %v215
    %771 = vmatprep.subr.mxu0 %v214
    %772 = vmatpush1.msra.mxu0 %v213
    %773 = vmatprep.subr.mxu0 %v212
    %774 = vmatpush1.msra.mxu0 %v211
    %775 = vmatprep.subr.mxu0 %v210
    %776 = vmatpush1.msra.mxu0 %v209
    %777 = vmatprep.subr.mxu0 %v208
    %778 = vmatpush1.msra.mxu0 %v207
    %779 = vmatprep.subr.mxu0 %v206
    %780 = vmatpush1.msra.mxu0 %v205
    %781 = vmatprep.subr.mxu0 0.0
    %782 = vmatpush2.msra.mxu0 0.0
    %783 = vmatprep.subr.mxu0 0.0
    %784 = vmatpush2.msra.mxu0 0.0
    %785 = vmatprep.subr.mxu0 0.0
    %786 = vmatpush2.msra.mxu0 0.0
    %787 = vmatprep.subr.mxu0 0.0
    %788 = vmatpush2.msra.mxu0 0.0
    %789 = vmatprep.subr.mxu0 0.0
    %790 = vmatpush2.msra.mxu0 0.0
    %791 = vmatprep.subr.mxu0 0.0
    %792 = vmatpush2.msra.mxu0 0.0
    %793 = vmatprep.subr.mxu0 0.0
    %794 = vmatpush2.msra.mxu0 0.0
    %795 = vmatprep.subr.mxu0 0.0
    %796 = vmatpush2.msra.mxu0 0.0
    %797 = vmatprep.subr.mxu0 0.0
    %798 = vmatpush2.msra.mxu0 0.0
    %799 = vmatprep.subr.mxu0 0.0
    %800 = vmatpush2.msra.mxu0 0.0
    %801 = vmatprep.subr.mxu0 0.0
    %802 = vmatpush2.msra.mxu0 0.0
    %803 = vmatprep.subr.mxu0 0.0
    %804 = vmatpush2.msra.mxu0 0.0
    %805 = vmatprep.subr.mxu0 0.0
    %806 = vmatpush2.msra.mxu0 0.0
    %807 = vmatprep.subr.mxu0 0.0
    %808 = vmatpush2.msra.mxu0 0.0
    %809 = vmatprep.subr.mxu0 0.0
    %810 = vmatpush2.msra.mxu0 0.0
    %811 = vmatprep.subr.mxu0 0.0
    %812 = vmatpush2.msra.mxu0 0.0
    %813 = vmatprep.mubr.f32.mxu0 0.0
    %814 = vmatmul.mubr.f32.gmra.mxu0 %v748
    %v815 = vpop.f32.mrf.mxu0
    %v816 = vadd.f32 0.0, %v815
    %v817 = vpop.f32.mrf.mxu0
    %v818 = vadd.f32 0.0, %v817
    %819 = vdwg.mxu0
    %v820 = vadd.f32 %v818, %v28
    %v821 = vtanh.pop %v820
    %v822 = vmul.f32 %v30, %v821
    %v823 = vadd.f32 %v822, %v31
    %v824 = vmul.f32 %v823, %v706
    %826 = vrot.lane.b32.xlu0 %v823, 32
    %v827 = vpop.permute.xlu0 %826
    %v829 = vmul.f32 %v823, %v827
    %831 = vrot.lane.b32.xlu0 %v829, 32
    %v832 = vpop.permute.xlu0 %831
    %v834 = vadd.f32 %v824, %v832
    %v835 = vtanh.pop %v834
    %837 = vrot.lane.b32.xlu0 %v835, 32
    %v838 = vpop.permute.xlu0 %837
    %v840 = vmul.f32 %v823, %v838
    %v841 = vadd.f32 %v816, %v158
    %v842 = vtanh.pop %v841
    %v843 = vmul.f32 %v30, %v842
    %v844 = vadd.f32 %v843, %v31
    %v845 = vmul.f32 %v844, %v727
    %847 = vrot.lane.b32.xlu0 %v844, 32
    %v848 = vpop.permute.xlu0 %847
    %v850 = vmul.f32 %v844, %v848
    %852 = vrot.lane.b32.xlu0 %v850, 32
    %v853 = vpop.permute.xlu0 %852
    %v855 = vadd.f32 %v845, %v853
    %v856 = vtanh.pop %v855
    %858 = vrot.lane.b32.xlu0 %v856, 32
    %v859 = vpop.permute.xlu0 %858
    %v861 = vmul.f32 %v844, %v859
    %863 = vrot.lane.b32.xlu0 %v861, 64
    %v864 = vpop.permute.xlu0 %863
    %866 = vrot.lane.b32.xlu0 %v861, 96
    %v867 = vpop.permute.xlu0 %866
    %870 = vrot.lane.b32.xlu0 %v840, 32
    %v871 = vpop.permute.xlu0 %870
    %v873 = vsel %vm198, %v864, %v867
    %v874 = vsel %vm200, %v873, %v840
    %v875 = vsel %vm202, %v874, %v871
    %v876 = vmul.f32 %v875, %v29
    %877 = vmatprep.subr.mxu0 %v236
    %878 = vmatpush1.msra.mxu0 %v235
    %879 = vmatprep.subr.mxu0 %v234
    %880 = vmatpush1.msra.mxu0 %v233
    %881 = vmatprep.subr.mxu0 %v232
    %882 = vmatpush1.msra.mxu0 %v231
    %883 = vmatprep.subr.mxu0 %v230
    %884 = vmatpush1.msra.mxu0 %v229
    %885 = vmatprep.subr.mxu0 %v228
    %886 = vmatpush1.msra.mxu0 %v227
    %887 = vmatprep.subr.mxu0 %v226
    %888 = vmatpush1.msra.mxu0 %v225
    %889 = vmatprep.subr.mxu0 %v224
    %890 = vmatpush1.msra.mxu0 %v223
    %891 = vmatprep.subr.mxu0 %v222
    %892 = vmatpush1.msra.mxu0 %v221
    %893 = vmatprep.subr.mxu0 %v220
    %894 = vmatpush1.msra.mxu0 %v219
    %895 = vmatprep.subr.mxu0 %v218
    %896 = vmatpush1.msra.mxu0 %v217
    %897 = vmatprep.subr.mxu0 %v216
    %898 = vmatpush1.msra.mxu0 %v215
    %899 = vmatprep.subr.mxu0 %v214
    %900 = vmatpush1.msra.mxu0 %v213
    %901 = vmatprep.subr.mxu0 %v212
    %902 = vmatpush1.msra.mxu0 %v211
    %903 = vmatprep.subr.mxu0 %v210
    %904 = vmatpush1.msra.mxu0 %v209
    %905 = vmatprep.subr.mxu0 %v208
    %906 = vmatpush1.msra.mxu0 %v207
    %907 = vmatprep.subr.mxu0 %v206
    %908 = vmatpush1.msra.mxu0 %v205
    %909 = vmatprep.subr.mxu0 0.0
    %910 = vmatpush2.msra.mxu0 0.0
    %911 = vmatprep.subr.mxu0 0.0
    %912 = vmatpush2.msra.mxu0 0.0
    %913 = vmatprep.subr.mxu0 0.0
    %914 = vmatpush2.msra.mxu0 0.0
    %915 = vmatprep.subr.mxu0 0.0
    %916 = vmatpush2.msra.mxu0 0.0
    %917 = vmatprep.subr.mxu0 0.0
    %918 = vmatpush2.msra.mxu0 0.0
    %919 = vmatprep.subr.mxu0 0.0
    %920 = vmatpush2.msra.mxu0 0.0
    %921 = vmatprep.subr.mxu0 0.0
    %922 = vmatpush2.msra.mxu0 0.0
    %923 = vmatprep.subr.mxu0 0.0
    %924 = vmatpush2.msra.mxu0 0.0
    %925 = vmatprep.subr.mxu0 0.0
    %926 = vmatpush2.msra.mxu0 0.0
    %927 = vmatprep.subr.mxu0 0.0
    %928 = vmatpush2.msra.mxu0 0.0
    %929 = vmatprep.subr.mxu0 0.0
    %930 = vmatpush2.msra.mxu0 0.0
    %931 = vmatprep.subr.mxu0 0.0
    %932 = vmatpush2.msra.mxu0 0.0
    %933 = vmatprep.subr.mxu0 0.0
    %934 = vmatpush2.msra.mxu0 0.0
    %935 = vmatprep.subr.mxu0 0.0
    %936 = vmatpush2.msra.mxu0 0.0
    %937 = vmatprep.subr.mxu0 0.0
    %938 = vmatpush2.msra.mxu0 0.0
    %939 = vmatprep.subr.mxu0 0.0
    %940 = vmatpush2.msra.mxu0 0.0
    %941 = vmatprep.mubr.f32.mxu0 0.0
    %942 = vmatmul.mubr.f32.gmra.mxu0 %v876
    %v943 = vpop.f32.mrf.mxu0
    %v944 = vadd.f32 0.0, %v943
    %v945 = vpop.f32.mrf.mxu0
    %v946 = vadd.f32 0.0, %v945
    %947 = vdwg.mxu0
    %v948 = vadd.f32 %v946, %v28
    %v949 = vtanh.pop %v948
    %v950 = vmul.f32 %v30, %v949
    %v951 = vadd.f32 %v950, %v31
    %v952 = vmul.f32 %v951, %v834
    %954 = vrot.lane.b32.xlu0 %v951, 32
    %v955 = vpop.permute.xlu0 %954
    %v957 = vmul.f32 %v951, %v955
    %959 = vrot.lane.b32.xlu0 %v957, 32
    %v960 = vpop.permute.xlu0 %959
    %v962 = vadd.f32 %v952, %v960
    %v963 = vtanh.pop %v962
    %965 = vrot.lane.b32.xlu0 %v963, 32
    %v966 = vpop.permute.xlu0 %965
    %v968 = vmul.f32 %v951, %v966
    %v969 = vadd.f32 %v944, %v163
    %v970 = vtanh.pop %v969
    %v971 = vmul.f32 %v30, %v970
    %v972 = vadd.f32 %v971, %v31
    %v973 = vmul.f32 %v972, %v855
    %975 = vrot.lane.b32.xlu0 %v972, 32
    %v976 = vpop.permute.xlu0 %975
    %v978 = vmul.f32 %v972, %v976
    %980 = vrot.lane.b32.xlu0 %v978, 32
    %v981 = vpop.permute.xlu0 %980
    %v983 = vadd.f32 %v973, %v981
    %v984 = vtanh.pop %v983
    %986 = vrot.lane.b32.xlu0 %v984, 32
    %v987 = vpop.permute.xlu0 %986
    %v989 = vmul.f32 %v972, %v987
    %991 = vrot.lane.b32.xlu0 %v989, 64
    %v992 = vpop.permute.xlu0 %991
    %994 = vrot.lane.b32.xlu0 %v989, 96
    %v995 = vpop.permute.xlu0 %994
    %998 = vrot.lane.b32.xlu0 %v968, 32
    %v999 = vpop.permute.xlu0 %998
    %v1001 = vsel %vm198, %v992, %v995
    %v1002 = vsel %vm200, %v1001, %v968
    %v1003 = vsel %vm202, %v1002, %v999
    %v1004 = vmul.f32 %v1003, %v29
    %1005 = vmatprep.subr.mxu0 %v236
    %1006 = vmatpush1.msra.mxu0 %v235
    %1007 = vmatprep.subr.mxu0 %v234
    %1008 = vmatpush1.msra.mxu0 %v233
    %1009 = vmatprep.subr.mxu0 %v232
    %1010 = vmatpush1.msra.mxu0 %v231
    %1011 = vmatprep.subr.mxu0 %v230
    %1012 = vmatpush1.msra.mxu0 %v229
    %1013 = vmatprep.subr.mxu0 %v228
    %1014 = vmatpush1.msra.mxu0 %v227
    %1015 = vmatprep.subr.mxu0 %v226
    %1016 = vmatpush1.msra.mxu0 %v225
    %1017 = vmatprep.subr.mxu0 %v224
    %1018 = vmatpush1.msra.mxu0 %v223
    %1019 = vmatprep.subr.mxu0 %v222
    %1020 = vmatpush1.msra.mxu0 %v221
    %1021 = vmatprep.subr.mxu0 %v220
    %1022 = vmatpush1.msra.mxu0 %v219
    %1023 = vmatprep.subr.mxu0 %v218
    %1024 = vmatpush1.msra.mxu0 %v217
    %1025 = vmatprep.subr.mxu0 %v216
    %1026 = vmatpush1.msra.mxu0 %v215
    %1027 = vmatprep.subr.mxu0 %v214
    %1028 = vmatpush1.msra.mxu0 %v213
    %1029 = vmatprep.subr.mxu0 %v212
    %1030 = vmatpush1.msra.mxu0 %v211
    %1031 = vmatprep.subr.mxu0 %v210
    %1032 = vmatpush1.msra.mxu0 %v209
    %1033 = vmatprep.subr.mxu0 %v208
    %1034 = vmatpush1.msra.mxu0 %v207
    %1035 = vmatprep.subr.mxu0 %v206
    %1036 = vmatpush1.msra.mxu0 %v205
    %1037 = vmatprep.subr.mxu0 0.0
    %1038 = vmatpush2.msra.mxu0 0.0
    %1039 = vmatprep.subr.mxu0 0.0
    %1040 = vmatpush2.msra.mxu0 0.0
    %1041 = vmatprep.subr.mxu0 0.0
    %1042 = vmatpush2.msra.mxu0 0.0
    %1043 = vmatprep.subr.mxu0 0.0
    %1044 = vmatpush2.msra.mxu0 0.0
    %1045 = vmatprep.subr.mxu0 0.0
    %1046 = vmatpush2.msra.mxu0 0.0
    %1047 = vmatprep.subr.mxu0 0.0
    %1048 = vmatpush2.msra.mxu0 0.0
    %1049 = vmatprep.subr.mxu0 0.0
    %1050 = vmatpush2.msra.mxu0 0.0
    %1051 = vmatprep.subr.mxu0 0.0
    %1052 = vmatpush2.msra.mxu0 0.0
    %1053 = vmatprep.subr.mxu0 0.0
    %1054 = vmatpush2.msra.mxu0 0.0
    %1055 = vmatprep.subr.mxu0 0.0
    %1056 = vmatpush2.msra.mxu0 0.0
    %1057 = vmatprep.subr.mxu0 0.0
    %1058 = vmatpush2.msra.mxu0 0.0
    %1059 = vmatprep.subr.mxu0 0.0
    %1060 = vmatpush2.msra.mxu0 0.0
    %1061 = vmatprep.subr.mxu0 0.0
    %1062 = vmatpush2.msra.mxu0 0.0
    %1063 = vmatprep.subr.mxu0 0.0
    %1064 = vmatpush2.msra.mxu0 0.0
    %1065 = vmatprep.subr.mxu0 0.0
    %1066 = vmatpush2.msra.mxu0 0.0
    %1067 = vmatprep.subr.mxu0 0.0
    %1068 = vmatpush2.msra.mxu0 0.0
    %1069 = vmatprep.mubr.f32.mxu0 0.0
    %1070 = vmatmul.mubr.f32.gmra.mxu0 %v1004
    %v1071 = vpop.f32.mrf.mxu0
    %v1072 = vadd.f32 0.0, %v1071
    %v1073 = vpop.f32.mrf.mxu0
    %v1074 = vadd.f32 0.0, %v1073
    %1075 = vdwg.mxu0
    %v1076 = vadd.f32 %v1074, %v28
    %v1077 = vtanh.pop %v1076
    %v1078 = vmul.f32 %v30, %v1077
    %v1079 = vadd.f32 %v1078, %v31
    %v1080 = vmul.f32 %v1079, %v962
    %1082 = vrot.lane.b32.xlu0 %v1079, 32
    %v1083 = vpop.permute.xlu0 %1082
    %v1085 = vmul.f32 %v1079, %v1083
    %1087 = vrot.lane.b32.xlu0 %v1085, 32
    %v1088 = vpop.permute.xlu0 %1087
    %v1090 = vadd.f32 %v1080, %v1088
    %v1091 = vtanh.pop %v1090
    %1093 = vrot.lane.b32.xlu0 %v1091, 32
    %v1094 = vpop.permute.xlu0 %1093
    %v1096 = vmul.f32 %v1079, %v1094
    %v1097 = vadd.f32 %v1072, %v168
    %v1098 = vtanh.pop %v1097
    %v1099 = vmul.f32 %v30, %v1098
    %v1100 = vadd.f32 %v1099, %v31
    %v1101 = vmul.f32 %v1100, %v983
    %1103 = vrot.lane.b32.xlu0 %v1100, 32
    %v1104 = vpop.permute.xlu0 %1103
    %v1106 = vmul.f32 %v1100, %v1104
    %1108 = vrot.lane.b32.xlu0 %v1106, 32
    %v1109 = vpop.permute.xlu0 %1108
    %v1111 = vadd.f32 %v1101, %v1109
    %v1112 = vtanh.pop %v1111
    %1114 = vrot.lane.b32.xlu0 %v1112, 32
    %v1115 = vpop.permute.xlu0 %1114
    %v1117 = vmul.f32 %v1100, %v1115
    %1119 = vrot.lane.b32.xlu0 %v1117, 64
    %v1120 = vpop.permute.xlu0 %1119
    %1122 = vrot.lane.b32.xlu0 %v1117, 96
    %v1123 = vpop.permute.xlu0 %1122
    %1126 = vrot.lane.b32.xlu0 %v1096, 32
    %v1127 = vpop.permute.xlu0 %1126
    %v1129 = vsel %vm198, %v1120, %v1123
    %v1130 = vsel %vm200, %v1129, %v1096
    %v1131 = vsel %vm202, %v1130, %v1127
    %v1132 = vmul.f32 %v1131, %v29
    %1133 = vmatprep.subr.mxu0 %v236
    %1134 = vmatpush1.msra.mxu0 %v235
    %1135 = vmatprep.subr.mxu0 %v234
    %1136 = vmatpush1.msra.mxu0 %v233
    %1137 = vmatprep.subr.mxu0 %v232
    %1138 = vmatpush1.msra.mxu0 %v231
    %1139 = vmatprep.subr.mxu0 %v230
    %1140 = vmatpush1.msra.mxu0 %v229
    %1141 = vmatprep.subr.mxu0 %v228
    %1142 = vmatpush1.msra.mxu0 %v227
    %1143 = vmatprep.subr.mxu0 %v226
    %1144 = vmatpush1.msra.mxu0 %v225
    %1145 = vmatprep.subr.mxu0 %v224
    %1146 = vmatpush1.msra.mxu0 %v223
    %1147 = vmatprep.subr.mxu0 %v222
    %1148 = vmatpush1.msra.mxu0 %v221
    %1149 = vmatprep.subr.mxu0 %v220
    %1150 = vmatpush1.msra.mxu0 %v219
    %1151 = vmatprep.subr.mxu0 %v218
    %1152 = vmatpush1.msra.mxu0 %v217
    %1153 = vmatprep.subr.mxu0 %v216
    %1154 = vmatpush1.msra.mxu0 %v215
    %1155 = vmatprep.subr.mxu0 %v214
    %1156 = vmatpush1.msra.mxu0 %v213
    %1157 = vmatprep.subr.mxu0 %v212
    %1158 = vmatpush1.msra.mxu0 %v211
    %1159 = vmatprep.subr.mxu0 %v210
    %1160 = vmatpush1.msra.mxu0 %v209
    %1161 = vmatprep.subr.mxu0 %v208
    %1162 = vmatpush1.msra.mxu0 %v207
    %1163 = vmatprep.subr.mxu0 %v206
    %1164 = vmatpush1.msra.mxu0 %v205
    %1165 = vmatprep.subr.mxu0 0.0
    %1166 = vmatpush2.msra.mxu0 0.0
    %1167 = vmatprep.subr.mxu0 0.0
    %1168 = vmatpush2.msra.mxu0 0.0
    %1169 = vmatprep.subr.mxu0 0.0
    %1170 = vmatpush2.msra.mxu0 0.0
    %1171 = vmatprep.subr.mxu0 0.0
    %1172 = vmatpush2.msra.mxu0 0.0
    %1173 = vmatprep.subr.mxu0 0.0
    %1174 = vmatpush2.msra.mxu0 0.0
    %1175 = vmatprep.subr.mxu0 0.0
    %1176 = vmatpush2.msra.mxu0 0.0
    %1177 = vmatprep.subr.mxu0 0.0
    %1178 = vmatpush2.msra.mxu0 0.0
    %1179 = vmatprep.subr.mxu0 0.0
    %1180 = vmatpush2.msra.mxu0 0.0
    %1181 = vmatprep.subr.mxu0 0.0
    %1182 = vmatpush2.msra.mxu0 0.0
    %1183 = vmatprep.subr.mxu0 0.0
    %1184 = vmatpush2.msra.mxu0 0.0
    %1185 = vmatprep.subr.mxu0 0.0
    %1186 = vmatpush2.msra.mxu0 0.0
    %1187 = vmatprep.subr.mxu0 0.0
    %1188 = vmatpush2.msra.mxu0 0.0
    %1189 = vmatprep.subr.mxu0 0.0
    %1190 = vmatpush2.msra.mxu0 0.0
    %1191 = vmatprep.subr.mxu0 0.0
    %1192 = vmatpush2.msra.mxu0 0.0
    %1193 = vmatprep.subr.mxu0 0.0
    %1194 = vmatpush2.msra.mxu0 0.0
    %1195 = vmatprep.subr.mxu0 0.0
    %1196 = vmatpush2.msra.mxu0 0.0
    %1197 = vmatprep.mubr.f32.mxu0 0.0
    %1198 = vmatmul.mubr.f32.gmra.mxu0 %v1132
    %v1199 = vpop.f32.mrf.mxu0
    %v1200 = vpop.f32.mrf.mxu0
    %v1201 = vadd.f32 0.0, %v1200
    %1202 = vdwg.mxu0
    %v1203 = vadd.f32 %v1201, %v28
    %v1204 = vtanh.pop %v1203
    %v1205 = vmul.f32 %v30, %v1204
    %v1206 = vadd.f32 %v1205, %v31
    %v1207 = vmul.f32 %v1206, %v1090
    %1209 = vrot.lane.b32.xlu0 %v1206, 32
    %v1210 = vpop.permute.xlu0 %1209
    %v1212 = vmul.f32 %v1206, %v1210
    %1214 = vrot.lane.b32.xlu0 %v1212, 32
    %v1215 = vpop.permute.xlu0 %1214
    %v1217 = vadd.f32 %v1207, %v1215
    %v1218 = vtanh.pop %v1217
    %1220 = vrot.lane.b32.xlu0 %v1218, 32
    %v1221 = vpop.permute.xlu0 %1220
    %v1223 = vmul.f32 %v1206, %v1221
    %v1225 = vrot.slane %v1223, 4
    %vm1227 = vcmask 1043456
    %v1228 = vsel %vm1227, %v1225, %v1225
    %1229 = vrot.lane.b32.xlu0 %v1223, 64
    %v1230 = vpop.permute.xlu0 %1229
    %1233 = vrot.lane.b32.xlu0 %v1228, 96
    %v1234 = vpop.permute.xlu0 %1233
    %v1236 = vsel %vm198, %v1230, %v1234
    %v1237 = vld [vmem:[#allocation2 + $0x28] sm:$0xff]
    %v1238 = vld [vmem:[#allocation2 + $0x30] sm:$0xff]
    %v1239 = vld [vmem:[#allocation2 + $0x38] sm:$0xff]
    %v1240 = vld [vmem:[#allocation2 + $0x40] sm:$0xff]
    %v1241 = vld [vmem:[#allocation2 + $0x48] sm:$0xff]
    %v1242 = vld [vmem:[#allocation2 + $0x50] sm:$0xff]
    %v1243 = vld [vmem:[#allocation2 + $0x58] sm:$0xff]
    %v1244 = vld [vmem:[#allocation2 + $0x60] sm:$0xff]
    %v1245 = vld [vmem:[#allocation2 + $0x168] sm:$0xff]
    %v1247 = vsel %vm200, %v1236, 0
    %1249 = vmatprep.subr.mxu0 0.0
    %1250 = vmatpush1.msra.mxu0 0.0
    %1251 = vmatprep.subr.mxu0 0.0
    %1252 = vmatpush1.msra.mxu0 0.0
    %1253 = vmatprep.subr.mxu0 0.0
    %1254 = vmatpush1.msra.mxu0 0.0
    %1255 = vmatprep.subr.mxu0 0.0
    %1256 = vmatpush1.msra.mxu0 0.0
    %1257 = vmatprep.subr.mxu0 0.0
    %1258 = vmatpush1.msra.mxu0 0.0
    %1259 = vmatprep.subr.mxu0 0.0
    %1260 = vmatpush1.msra.mxu0 0.0
    %1261 = vmatprep.subr.mxu0 0.0
    %1262 = vmatpush1.msra.mxu0 0.0
    %1263 = vmatprep.subr.mxu0 0.0
    %1264 = vmatpush1.msra.mxu0 0.0
    %1265 = vmatprep.subr.mxu0 0.0
    %1266 = vmatpush1.msra.mxu0 %v1244
    %1267 = vmatprep.subr.mxu0 0.0
    %1268 = vmatpush1.msra.mxu0 %v1243
    %1269 = vmatprep.subr.mxu0 0.0
    %1270 = vmatpush1.msra.mxu0 %v1242
    %1271 = vmatprep.subr.mxu0 0.0
    %1272 = vmatpush1.msra.mxu0 %v1241
    %1273 = vmatprep.subr.mxu0 0.0
    %1274 = vmatpush1.msra.mxu0 %v1240
    %1275 = vmatprep.subr.mxu0 0.0
    %1276 = vmatpush1.msra.mxu0 %v1239
    %1277 = vmatprep.subr.mxu0 0.0
    %1278 = vmatpush1.msra.mxu0 %v1238
    %1279 = vmatprep.subr.mxu0 0.0
    %1280 = vmatpush1.msra.mxu0 %v1237
    %1281 = vmatprep.subr.mxu0 0.0
    %1282 = vmatpush2.msra.mxu0 0.0
    %1283 = vmatprep.subr.mxu0 0.0
    %1284 = vmatpush2.msra.mxu0 0.0
    %1285 = vmatprep.subr.mxu0 0.0
    %1286 = vmatpush2.msra.mxu0 0.0
    %1287 = vmatprep.subr.mxu0 0.0
    %1288 = vmatpush2.msra.mxu0 0.0
    %1289 = vmatprep.subr.mxu0 0.0
    %1290 = vmatpush2.msra.mxu0 0.0
    %1291 = vmatprep.subr.mxu0 0.0
    %1292 = vmatpush2.msra.mxu0 0.0
    %1293 = vmatprep.subr.mxu0 0.0
    %1294 = vmatpush2.msra.mxu0 0.0
    %1295 = vmatprep.subr.mxu0 0.0
    %1296 = vmatpush2.msra.mxu0 0.0
    %1297 = vmatprep.subr.mxu0 0.0
    %1298 = vmatpush2.msra.mxu0 0.0
    %1299 = vmatprep.subr.mxu0 0.0
    %1300 = vmatpush2.msra.mxu0 0.0
    %1301 = vmatprep.subr.mxu0 0.0
    %1302 = vmatpush2.msra.mxu0 0.0
    %1303 = vmatprep.subr.mxu0 0.0
    %1304 = vmatpush2.msra.mxu0 0.0
    %1305 = vmatprep.subr.mxu0 0.0
    %1306 = vmatpush2.msra.mxu0 0.0
    %1307 = vmatprep.subr.mxu0 0.0
    %1308 = vmatpush2.msra.mxu0 0.0
    %1309 = vmatprep.subr.mxu0 0.0
    %1310 = vmatpush2.msra.mxu0 0.0
    %1311 = vmatprep.subr.mxu0 0.0
    %1312 = vmatpush2.msra.mxu0 0.0
    %1313 = vmatprep.mubr.f32.mxu0 0.0
    %1314 = vmatmul.mubr.f32.gmra.mxu0 %v1247
    %v1315 = vpop.f32.mrf.mxu0
    %v1316 = vadd.f32 %v1245, %v1315
    %v1317 = vpop.f32.mrf.mxu0
    %1318 = vdwg.mxu0
    %v1319 = vmax.f32 %v1316, 0.0
    %v1320 = vld [vmem:[#allocation2 + $0x68] sm:$0xff]
    %v1321 = vld [vmem:[#allocation2 + $0x70] sm:$0xff]
    %v1322 = vld [vmem:[#allocation2 + $0x78] sm:$0xff]
    %v1323 = vld [vmem:[#allocation2 + $0x80] sm:$0xff]
    %v1324 = vld [vmem:[#allocation2 + $0x88] sm:$0xff]
    %v1325 = vld [vmem:[#allocation2 + $0x90] sm:$0xff]
    %v1326 = vld [vmem:[#allocation2 + $0x98] sm:$0xff]
    %v1327 = vld [vmem:[#allocation2 + $0xa0] sm:$0xff]
    %v1328 = vld [vmem:[#allocation2 + $0xa8] sm:$0xff]
    %v1329 = vld [vmem:[#allocation2 + $0xb0] sm:$0xff]
    %v1330 = vld [vmem:[#allocation2 + $0xb8] sm:$0xff]
    %v1331 = vld [vmem:[#allocation2 + $0xc0] sm:$0xff]
    %v1332 = vld [vmem:[#allocation2 + $0xc8] sm:$0xff]
    %v1333 = vld [vmem:[#allocation2 + $0xd0] sm:$0xff]
    %v1334 = vld [vmem:[#allocation2 + $0xd8] sm:$0xff]
    %v1335 = vld [vmem:[#allocation2 + $0xe0] sm:$0xff]
    %v1336 = vld [vmem:[#allocation2 + $0x170] sm:$0xff]
    %1337 = vmatprep.subr.mxu0 0.0
    %1338 = vmatpush1.msra.mxu0 %v1335
    %1339 = vmatprep.subr.mxu0 0.0
    %1340 = vmatpush1.msra.mxu0 %v1334
    %1341 = vmatprep.subr.mxu0 0.0
    %1342 = vmatpush1.msra.mxu0 %v1333
    %1343 = vmatprep.subr.mxu0 0.0
    %1344 = vmatpush1.msra.mxu0 %v1332
    %1345 = vmatprep.subr.mxu0 0.0
    %1346 = vmatpush1.msra.mxu0 %v1331
    %1347 = vmatprep.subr.mxu0 0.0
    %1348 = vmatpush1.msra.mxu0 %v1330
    %1349 = vmatprep.subr.mxu0 0.0
    %1350 = vmatpush1.msra.mxu0 %v1329
    %1351 = vmatprep.subr.mxu0 0.0
    %1352 = vmatpush1.msra.mxu0 %v1328
    %1353 = vmatprep.subr.mxu0 0.0
    %1354 = vmatpush1.msra.mxu0 %v1327
    %1355 = vmatprep.subr.mxu0 0.0
    %1356 = vmatpush1.msra.mxu0 %v1326
    %1357 = vmatprep.subr.mxu0 0.0
    %1358 = vmatpush1.msra.mxu0 %v1325
    %1359 = vmatprep.subr.mxu0 0.0
    %1360 = vmatpush1.msra.mxu0 %v1324
    %1361 = vmatprep.subr.mxu0 0.0
    %1362 = vmatpush1.msra.mxu0 %v1323
    %1363 = vmatprep.subr.mxu0 0.0
    %1364 = vmatpush1.msra.mxu0 %v1322
    %1365 = vmatprep.subr.mxu0 0.0
    %1366 = vmatpush1.msra.mxu0 %v1321
    %1367 = vmatprep.subr.mxu0 0.0
    %1368 = vmatpush1.msra.mxu0 %v1320
    %1369 = vmatprep.subr.mxu0 0.0
    %1370 = vmatpush2.msra.mxu0 0.0
    %1371 = vmatprep.subr.mxu0 0.0
    %1372 = vmatpush2.msra.mxu0 0.0
    %1373 = vmatprep.subr.mxu0 0.0
    %1374 = vmatpush2.msra.mxu0 0.0
    %1375 = vmatprep.subr.mxu0 0.0
    %1376 = vmatpush2.msra.mxu0 0.0
    %1377 = vmatprep.subr.mxu0 0.0
    %1378 = vmatpush2.msra.mxu0 0.0
    %1379 = vmatprep.subr.mxu0 0.0
    %1380 = vmatpush2.msra.mxu0 0.0
    %1381 = vmatprep.subr.mxu0 0.0
    %1382 = vmatpush2.msra.mxu0 0.0
    %1383 = vmatprep.subr.mxu0 0.0
    %1384 = vmatpush2.msra.mxu0 0.0
    %1385 = vmatprep.subr.mxu0 0.0
    %1386 = vmatpush2.msra.mxu0 0.0
    %1387 = vmatprep.subr.mxu0 0.0
    %1388 = vmatpush2.msra.mxu0 0.0
    %1389 = vmatprep.subr.mxu0 0.0
    %1390 = vmatpush2.msra.mxu0 0.0
    %1391 = vmatprep.subr.mxu0 0.0
    %1392 = vmatpush2.msra.mxu0 0.0
    %1393 = vmatprep.subr.mxu0 0.0
    %1394 = vmatpush2.msra.mxu0 0.0
    %1395 = vmatprep.subr.mxu0 0.0
    %1396 = vmatpush2.msra.mxu0 0.0
    %1397 = vmatprep.subr.mxu0 0.0
    %1398 = vmatpush2.msra.mxu0 0.0
    %1399 = vmatprep.subr.mxu0 0.0
    %1400 = vmatpush2.msra.mxu0 0.0
    %1401 = vmatprep.mubr.f32.mxu0 0.0
    %1402 = vmatmul.mubr.f32.gmra.mxu0 %v1319
    %v1403 = vpop.f32.mrf.mxu0
    %v1404 = vadd.f32 %v1336, %v1403
    %v1405 = vpop.f32.mrf.mxu0
    %1406 = vdwg.mxu0
    %v1407 = vmax.f32 %v1404, 0.0
    %v1408 = vld [vmem:[#allocation2 + $0xe8] sm:$0xff]
    %v1409 = vld [vmem:[#allocation2 + $0xf0] sm:$0xff]
    %v1410 = vld [vmem:[#allocation2 + $0xf8] sm:$0xff]
    %v1411 = vld [vmem:[#allocation2 + $0x100] sm:$0xff]
    %v1412 = vld [vmem:[#allocation2 + $0x108] sm:$0xff]
    %v1413 = vld [vmem:[#allocation2 + $0x110] sm:$0xff]
    %v1414 = vld [vmem:[#allocation2 + $0x118] sm:$0xff]
    %v1415 = vld [vmem:[#allocation2 + $0x120] sm:$0xff]
    %v1416 = vld [vmem:[#allocation2 + $0x128] sm:$0xff]
    %v1417 = vld [vmem:[#allocation2 + $0x130] sm:$0xff]
    %v1418 = vld [vmem:[#allocation2 + $0x138] sm:$0xff]
    %v1419 = vld [vmem:[#allocation2 + $0x140] sm:$0xff]
    %v1420 = vld [vmem:[#allocation2 + $0x148] sm:$0xff]
    %v1421 = vld [vmem:[#allocation2 + $0x150] sm:$0xff]
    %v1422 = vld [vmem:[#allocation2 + $0x158] sm:$0xff]
    %v1423 = vld [vmem:[#allocation2 + $0x160] sm:$0xff]
    %v1424 = vld [vmem:[#allocation2 + $0x178] sm:$0xff]
    %1425 = vmatprep.subr.mxu0 0.0
    %1426 = vmatpush1.msra.mxu0 %v1423
    %1427 = vmatprep.subr.mxu0 0.0
    %1428 = vmatpush1.msra.mxu0 %v1422
    %1429 = vmatprep.subr.mxu0 0.0
    %1430 = vmatpush1.msra.mxu0 %v1421
    %1431 = vmatprep.subr.mxu0 0.0
    %1432 = vmatpush1.msra.mxu0 %v1420
    %1433 = vmatprep.subr.mxu0 0.0
    %1434 = vmatpush1.msra.mxu0 %v1419
    %1435 = vmatprep.subr.mxu0 0.0
    %1436 = vmatpush1.msra.mxu0 %v1418
    %1437 = vmatprep.subr.mxu0 0.0
    %1438 = vmatpush1.msra.mxu0 %v1417
    %1439 = vmatprep.subr.mxu0 0.0
    %1440 = vmatpush1.msra.mxu0 %v1416
    %1441 = vmatprep.subr.mxu0 0.0
    %1442 = vmatpush1.msra.mxu0 %v1415
    %1443 = vmatprep.subr.mxu0 0.0
    %1444 = vmatpush1.msra.mxu0 %v1414
    %1445 = vmatprep.subr.mxu0 0.0
    %1446 = vmatpush1.msra.mxu0 %v1413
    %1447 = vmatprep.subr.mxu0 0.0
    %1448 = vmatpush1.msra.mxu0 %v1412
    %1449 = vmatprep.subr.mxu0 0.0
    %1450 = vmatpush1.msra.mxu0 %v1411
    %1451 = vmatprep.subr.mxu0 0.0
    %1452 = vmatpush1.msra.mxu0 %v1410
    %1453 = vmatprep.subr.mxu0 0.0
    %1454 = vmatpush1.msra.mxu0 %v1409
    %1455 = vmatprep.subr.mxu0 0.0
    %1456 = vmatpush1.msra.mxu0 %v1408
    %1457 = vmatprep.subr.mxu0 0.0
    %1458 = vmatpush2.msra.mxu0 0.0
    %1459 = vmatprep.subr.mxu0 0.0
    %1460 = vmatpush2.msra.mxu0 0.0
    %1461 = vmatprep.subr.mxu0 0.0
    %1462 = vmatpush2.msra.mxu0 0.0
    %1463 = vmatprep.subr.mxu0 0.0
    %1464 = vmatpush2.msra.mxu0 0.0
    %1465 = vmatprep.subr.mxu0 0.0
    %1466 = vmatpush2.msra.mxu0 0.0
    %1467 = vmatprep.subr.mxu0 0.0
    %1468 = vmatpush2.msra.mxu0 0.0
    %1469 = vmatprep.subr.mxu0 0.0
    %1470 = vmatpush2.msra.mxu0 0.0
    %1471 = vmatprep.subr.mxu0 0.0
    %1472 = vmatpush2.msra.mxu0 0.0
    %1473 = vmatprep.subr.mxu0 0.0
    %1474 = vmatpush2.msra.mxu0 0.0
    %1475 = vmatprep.subr.mxu0 0.0
    %1476 = vmatpush2.msra.mxu0 0.0
    %1477 = vmatprep.subr.mxu0 0.0
    %1478 = vmatpush2.msra.mxu0 0.0
    %1479 = vmatprep.subr.mxu0 0.0
    %1480 = vmatpush2.msra.mxu0 0.0
    %1481 = vmatprep.subr.mxu0 0.0
    %1482 = vmatpush2.msra.mxu0 0.0
    %1483 = vmatprep.subr.mxu0 0.0
    %1484 = vmatpush2.msra.mxu0 0.0
    %1485 = vmatprep.subr.mxu0 0.0
    %1486 = vmatpush2.msra.mxu0 0.0
    %1487 = vmatprep.subr.mxu0 0.0
    %1488 = vmatpush2.msra.mxu0 0.0
    %1489 = vmatprep.mubr.f32.mxu0 0.0
    %1490 = vmatmul.mubr.f32.gmra.mxu0 %v1407
    %v1491 = vpop.f32.mrf.mxu0
    %v1492 = vadd.f32 %v1424, %v1491
    %v1493 = vpop.f32.mrf.mxu0
    %1494 = vdwg.mxu0
    %1495 = vst [vmem:[%s3] sm:$0xff] %v1492
    // Predicated region
    $region18: #{lstm_regression_forward.1} parent=1 // pred_check
      _
    $region19: #{lstm_regression_forward.1} parent=1 // pred_check_branch
      %1497 = sbr.rel (0) target = $region21
    $region20: #{lstm_regression_forward.1} parent=1 // pred_region
      _
    $region21: #{lstm_regression_forward.1} parent=1 // pred_fallthru
      _
    // Predicated region
    $region22: #{lstm_regression_forward.1} parent=1 // pred_check
      _
    $region23: #{lstm_regression_forward.1} parent=1 // pred_check_branch
      %1499 = sbr.rel (0) target = $region25
    $region24: #{lstm_regression_forward.1} parent=1 // pred_region
      _
    $region25: #{lstm_regression_forward.1} parent=1 // pred_fallthru
      _
    %1500 = vsyncpa [#allocation3], 1

</llo_original>
